<compile_context>
chip_gen: v7x
topology: tpu7x:2x2x1
jax: 0.10.0
libtpu: 0.0.40
codegen_flags: <defaults>
</compile_context>

<pallas_src>
import functools

import jax
import jax.numpy as jnp
from jax import lax
from jax.experimental import pallas as pl
from jax.experimental.pallas import tpu as pltpu

MAX_ITER = 100
FISTA_TOL = 1e-5
# Convergence (early-break) test cadence.  1 == exact parity with the PyTorch
# per-iteration break; 4 keeps the full XLU reduce + sqrt off the critical path
# for 3 of every 4 iterations and only lets the loop run <=3 extra
# sub-tolerance iterations after convergence.
CONV_CHECK_EVERY = 4

# contract dim 0 of lhs with dim 0 of rhs (i.e. lhs^T @ rhs, no explicit transpose)
_DN_T0 = (((0,), (0,)), ((), ()))


def creat_real_dictionary(T, rr, theta):
    """JAX port of creatRealDictionary: row i = [1, rr^i*cos(i*theta), rr^i*sin(i*theta)]."""
    i = jnp.arange(T, dtype=jnp.float32)[:, None]                      # (T, 1)
    w1 = jnp.power(rr[None, :], i) * jnp.cos(i * theta[None, :])       # (T, N)
    w2 = jnp.power(rr[None, :], i) * jnp.sin(i * theta[None, :])       # (T, N)
    ones = jnp.ones((T, 1), jnp.float32)
    return jnp.concatenate([ones, w1, w2], axis=1)                     # (T, 1 + 2N)


def _round_up(n, m):
    return ((n + m - 1) // m) * m


def _fista_core(a_ref, c_minus, c_plus, x_sc, y_sc, t_sc, done_sc, *,
                max_iter, denom0, denom1, check_every):
    """Shared FISTA iteration loop for one (K, m_tile) lane tile.

    State lives in scratch refs so the whole per-iteration update is skipped
    (pl.when -> scf.if) once the tile has converged, matching the PyTorch
    data-dependent `break`."""
    x_sc[...] = jnp.zeros_like(x_sc)
    y_sc[...] = jnp.zeros_like(y_sc)
    t_sc[0] = jnp.float32(1.0)
    done_sc[0] = jnp.int32(0)

    A = a_ref[...]                                  # (K, K), hoisted prologue

    def body(it, carry):
        @pl.when(done_sc[0] == 0)
        def _():
            x_old = x_sc[...]
            y_old = y_sc[...]
            t_old = t_sc[0]
            Ay = jnp.dot(A, y_old, preferred_element_type=jnp.float32)
            x_new = (jnp.maximum(0.0, Ay + c_minus)
                     + jnp.minimum(0.0, Ay + c_plus))
            t_new = (1.0 + jnp.sqrt(1.0 + 4.0 * t_old * t_old)) * 0.5
            tt = (t_old - 1.0) / t_new
            dx = x_new - x_old
            y_sc[...] = x_new + tt * dx
            x_sc[...] = x_new
            t_sc[0] = t_new

            @pl.when((it % check_every) == 0)
            def _():
                # NOTE: per-lane-tile norm; PyTorch uses the norm over the full
                # (B, K, P) tensor.  Identical when B*P fits one tile (demo),
                # slightly earlier stop per tile otherwise.
                denom = jnp.where(it == 0, denom0, denom1)
                conv = (jnp.sqrt(jnp.sum(dx * dx)) / denom) < FISTA_TOL
                done_sc[0] = conv.astype(jnp.int32)

        return carry

    lax.fori_loop(0, max_iter, body, jnp.int32(0))
    return x_sc[...]


def _fista_pass1_kernel(wlam_ref, ds_ref, a_ref, y_ref, code_ref,
                        x_sc, y_sc, t_sc, done_sc, *,
                        max_iter, denom0, denom1, check_every):
    # DtY * Linv for this lane tile (Ds == D * Linv, contracted over time).
    dty = lax.dot_general(ds_ref[...], y_ref[...], _DN_T0,
                          preferred_element_type=jnp.float32)          # (K, Mt)
    w_lam = wlam_ref[0]          # lam / L; w == all-ones on the first pass
    c_minus = dty - w_lam
    c_plus = dty + w_lam
    x_fin = _fista_core(a_ref, c_minus, c_plus, x_sc, y_sc, t_sc, done_sc,
                        max_iter=max_iter, denom0=denom0, denom1=denom1,
                        check_every=check_every)
    code_ref[...] = x_fin


def _fista_pass2_kernel(ds_ref, a_ref, d_ref, y_ref, wp_ref, code_ref, recon_ref,
                        x_sc, y_sc, t_sc, done_sc, *,
                        max_iter, denom0, denom1, check_every):
    dty = lax.dot_general(ds_ref[...], y_ref[...], _DN_T0,
                          preferred_element_type=jnp.float32)          # (K, Mt)
    wp = wp_ref[...]             # W * lam / L, pre-scaled in the wrapper
    c_minus = dty - wp
    c_plus = dty + wp
    x_fin = _fista_core(a_ref, c_minus, c_plus, x_sc, y_sc, t_sc, done_sc,
                        max_iter=max_iter, denom0=denom0, denom1=denom1,
                        check_every=check_every)
    code_ref[...] = x_fin
    # fused reconstruction: dic (T, K) @ code (K, Mt) -> (T, Mt)
    recon_ref[...] = jnp.dot(d_ref[...], x_fin,
                             preferred_element_type=jnp.float32)


def _scratch_shapes(K, m_tile):
    return [
        pltpu.VMEM((K, m_tile), jnp.float32),   # x state
        pltpu.VMEM((K, m_tile), jnp.float32),   # y state
        pltpu.SMEM((1,), jnp.float32),          # t
        pltpu.SMEM((1,), jnp.int32),            # done flag
    ]


def _fista_pass1(consts, ds, a, y2, m_tile, p_feat):
    T, K = ds.shape
    M_pad = y2.shape[1]
    kernel = functools.partial(
        _fista_pass1_kernel, max_iter=MAX_ITER,
        denom0=float(p_feat), denom1=float(K), check_every=CONV_CHECK_EVERY)
    return pl.pallas_call(
        kernel,
        out_shape=jax.ShapeDtypeStruct((K, M_pad), jnp.float32),
        grid=(M_pad // m_tile,),
        in_specs=[
            pl.BlockSpec(memory_space=pltpu.MemorySpace.SMEM),    # lam/L scalar
            pl.BlockSpec((T, K), lambda m: (0, 0)),               # Ds = D/L
            pl.BlockSpec((K, K), lambda m: (0, 0)),               # A = I - DtD/L
            pl.BlockSpec((T, m_tile), lambda m: (0, m)),          # Y lane tile
        ],
        out_specs=pl.BlockSpec((K, m_tile), lambda m: (0, m)),    # code lane tile
        scratch_shapes=_scratch_shapes(K, m_tile),
        compiler_params=pltpu.CompilerParams(
            dimension_semantics=("parallel",)),
    )(consts, ds, a, y2)


def _fista_pass2(ds, a, dic, y2, wp, m_tile, p_feat):
    T, K = ds.shape
    M_pad = y2.shape[1]
    kernel = functools.partial(
        _fista_pass2_kernel, max_iter=MAX_ITER,
        denom0=float(p_feat), denom1=float(K), check_every=CONV_CHECK_EVERY)
    return pl.pallas_call(
        kernel,
        out_shape=(jax.ShapeDtypeStruct((K, M_pad), jnp.float32),
                   jax.ShapeDtypeStruct((T, M_pad), jnp.float32)),
        grid=(M_pad // m_tile,),
        in_specs=[
            pl.BlockSpec((T, K), lambda m: (0, 0)),               # Ds = D/L
            pl.BlockSpec((K, K), lambda m: (0, 0)),               # A
            pl.BlockSpec((T, K), lambda m: (0, 0)),               # D (for reconst)
            pl.BlockSpec((T, m_tile), lambda m: (0, m)),          # Y lane tile
            pl.BlockSpec((K, m_tile), lambda m: (0, m)),          # W*lam/L tile
        ],
        out_specs=(pl.BlockSpec((K, m_tile), lambda m: (0, m)),   # code
                   pl.BlockSpec((T, m_tile), lambda m: (0, m))),  # reconst
        scratch_shapes=_scratch_shapes(K, m_tile),
        compiler_params=pltpu.CompilerParams(
            dimension_semantics=("parallel",)),
    )(ds, a, dic, y2, wp)


def dyan_encoder_forward(rr, theta, lam, x, T, m_tile=512):
    """JAX/Pallas equivalent of DyanEncoder.forward(x, T) -> (sparseCode, dic, reconst)."""
    B, T_in, P = x.shape
    assert T_in == T
    dic = creat_real_dictionary(T, rr, theta)                          # (T, K)
    K = dic.shape[1]

    # ---- hoisted FISTA prologue (once, shared by both reweight passes) ----
    DtD = lax.dot_general(dic, dic, _DN_T0,
                          preferred_element_type=jnp.float32)          # (K, K)
    # torch.norm(DtD, 2) on a 2-D arg with dim=None == flattened (Frobenius) norm
    L = jnp.sqrt(jnp.sum(DtD * DtD))
    Linv = 1.0 / L
    A = jnp.eye(K, dtype=jnp.float32) - DtD * Linv                     # (K, K)
    Ds = (dic * Linv).astype(jnp.float32)                              # Ds^T Y == Linv * D^T Y
    w_lam = (lam * Linv).astype(jnp.float32)                           # scalar lam / L

    # ---- lane-dense layout: fold batch onto lanes, pad to the lane tile ----
    M = B * P
    m_tile = max(128, min(int(m_tile), _round_up(M, 128)))
    M_pad = _round_up(M, m_tile)
    y2 = jnp.transpose(x, (1, 0, 2)).reshape(T, M).astype(jnp.float32)
    y2 = jnp.pad(y2, ((0, 0), (0, M_pad - M)))        # zero columns give zero code

    consts = jnp.reshape(w_lam, (1,))

    # pass 1: w == all-ones is implicit in-kernel (no (K, M) ones slab DMA)
    code1 = _fista_pass1(consts, Ds, A, y2, m_tile, P)                 # (K, M_pad)

    # reweighting in the wrapper so the Frobenius norm stays *global* over the
    # unpadded (B, K, P) code, exactly matching torch.norm(w).
    c1 = code1[:, :M]
    w = 1.0 / (jnp.abs(c1) + 0.01)
    w2 = w / jnp.sqrt(jnp.sum(w * w)) * K
    wp = jnp.pad(w2 * w_lam, ((0, 0), (0, M_pad - M)))                 # pre-scaled by lam/L

    # pass 2, fused with the final reconstruction matmul
    code2, recon2 = _fista_pass2(Ds, A, dic, y2, wp, m_tile, P)

    code2 = code2[:, :M]
    recon2 = recon2[:, :M]
    sparse_code = jnp.transpose(code2.reshape(K, B, P), (1, 0, 2))     # (B, K, P)
    reconst = jnp.transpose(recon2.reshape(T, B, P), (1, 0, 2))        # (B, T, P)
    return sparse_code, dic, reconst


if __name__ == "__main__":
    key = jax.random.PRNGKey(0)
    k_rr, k_th, k_x = jax.random.split(key, 3)

    N_POLES = 16             # Drr / Dtheta length -> dictionary width K = 1 + 2*16 = 33
    B, T, P = 2, 8, 16       # batch, frames, feature dim  (M = B*P = 32 -> one 128-lane tile)
    LAM = 0.1

    Drr = jax.random.uniform(k_rr, (N_POLES,), jnp.float32, minval=0.8, maxval=1.1)
    Dtheta = jax.random.uniform(k_th, (N_POLES,), jnp.float32,
                                minval=0.0, maxval=float(jnp.pi))
    x = jax.random.normal(k_x, (B, T, P), jnp.float32)

    fwd = jax.jit(dyan_encoder_forward, static_argnames=("T", "m_tile"))
    sparse_code, dic, reconst = fwd(Drr, Dtheta, LAM, x, T=T, m_tile=512)
    jax.block_until_ready((sparse_code, dic, reconst))

    assert sparse_code.shape == (B, 1 + 2 * N_POLES, P)
    assert dic.shape == (T, 1 + 2 * N_POLES)
    assert reconst.shape == (B, T, P)
    assert bool(jnp.all(jnp.isfinite(sparse_code)))
    assert bool(jnp.all(jnp.isfinite(reconst)))
    print("KERNEL_OK")
</pallas_src>

<mosaic_0001>
module attributes {stable_mosaic.version = 11 : i64} {
  func.func @_fista_pass1_kernel(%arg0: i32, %arg1: memref<1xf32, #tpu.memory_space<smem>>, %arg2: memref<8x33xf32, #tpu.memory_space<vmem>>, %arg3: memref<33x33xf32, #tpu.memory_space<vmem>>, %arg4: memref<8x128xf32, #tpu.memory_space<vmem>>, %arg5: memref<33x128xf32, #tpu.memory_space<vmem>>, %arg6: memref<33x128xf32, #tpu.memory_space<vmem>>, %arg7: memref<33x128xf32, #tpu.memory_space<vmem>>, %arg8: memref<1xf32, #tpu.memory_space<smem>>, %arg9: memref<1xi32, #tpu.memory_space<smem>>) attributes {dimension_semantics = [#tpu.dimension_semantics<parallel>], iteration_bounds = array<i64: 1>, scalar_prefetch = 0 : i64, scratch_operands = 4 : i64, tpu.core_type = #tpu.core_type<tc>, window_params = [{transform_indices = @transform_0, window_bounds = array<i64: 1>}, {pipeline_mode = #tpu.pipeline_mode<synchronous>, transform_indices = @transform_1, window_bounds = array<i64: 8, 33>}, {pipeline_mode = #tpu.pipeline_mode<synchronous>, transform_indices = @transform_2, window_bounds = array<i64: 33, 33>}, {transform_indices = @transform_3, window_bounds = array<i64: 8, 128>}, {transform_indices = @transform_4, window_bounds = array<i64: 33, 128>}]} {
    %c0 = arith.constant 0 : index
    %c0_0 = arith.constant 0 : index
    %0 = vector.load %arg2[%c0, %c0_0] : memref<8x33xf32, #tpu.memory_space<vmem>>, vector<8x33xf32>
    %c0_1 = arith.constant 0 : index
    %c0_2 = arith.constant 0 : index
    %1 = vector.load %arg4[%c0_1, %c0_2] : memref<8x128xf32, #tpu.memory_space<vmem>>, vector<8x128xf32>
    %cst = arith.constant dense<0.000000e+00> : vector<33x128xf32>
    %2 = tpu.matmul %0, %1, %cst {dimension_numbers = #tpu.dot_dimension_numbers<[0], [0], [1], [1], [0, 1, 1, 1], [], []>} : vector<8x33xf32>, vector<8x128xf32>, vector<33x128xf32> -> vector<33x128xf32>
    %c0_3 = arith.constant 0 : index
    %3 = memref.load %arg1[%c0_3] : memref<1xf32, #tpu.memory_space<smem>>
    %4 = vector.broadcast %3 : f32 to vector<33x128xf32>
    %5 = arith.subf %2, %4 : vector<33x128xf32>
    %6 = vector.broadcast %3 : f32 to vector<33x128xf32>
    %7 = arith.addf %2, %6 : vector<33x128xf32>
    %cst_4 = arith.constant 0.000000e+00 : f32
    %8 = vector.broadcast %cst_4 : f32 to vector<33x128xf32>
    %c0_5 = arith.constant 0 : index
    %c0_6 = arith.constant 0 : index
    %9 = vector.load %arg6[%c0_5, %c0_6] : memref<33x128xf32, #tpu.memory_space<vmem>>, vector<33x128xf32>
    tpu.vector_store %arg6[%c0_5, %c0_6], %8 {strides = array<i32>} : memref<33x128xf32, #tpu.memory_space<vmem>>, vector<33x128xf32>,
    %cst_7 = arith.constant 0.000000e+00 : f32
    %10 = vector.broadcast %cst_7 : f32 to vector<33x128xf32>
    %c0_8 = arith.constant 0 : index
    %c0_9 = arith.constant 0 : index
    %11 = vector.load %arg7[%c0_8, %c0_9] : memref<33x128xf32, #tpu.memory_space<vmem>>, vector<33x128xf32>
    tpu.vector_store %arg7[%c0_8, %c0_9], %10 {strides = array<i32>} : memref<33x128xf32, #tpu.memory_space<vmem>>, vector<33x128xf32>,
    %cst_10 = arith.constant 1.000000e+00 : f32
    %c0_11 = arith.constant 0 : index
    %12 = memref.load %arg8[%c0_11] : memref<1xf32, #tpu.memory_space<smem>>
    memref.store %cst_10, %arg8[%c0_11] : memref<1xf32, #tpu.memory_space<smem>>
    %c0_i32 = arith.constant 0 : i32
    %c0_12 = arith.constant 0 : index
    %13 = memref.load %arg9[%c0_12] : memref<1xi32, #tpu.memory_space<smem>>
    memref.store %c0_i32, %arg9[%c0_12] : memref<1xi32, #tpu.memory_space<smem>>
    %c0_13 = arith.constant 0 : index
    %c0_14 = arith.constant 0 : index
    %14 = vector.load %arg3[%c0_13, %c0_14] : memref<33x33xf32, #tpu.memory_space<vmem>>, vector<33x33xf32>
    %c0_i32_15 = arith.constant 0 : i32
    %c100_i32 = arith.constant 100 : i32
    %15 = arith.addi %c0_i32_15, %c100_i32 : i32
    %c1_i32 = arith.constant 1 : i32
    scf.for %arg10 = %c0_i32_15 to %15 step %c1_i32  : i32 {
      %c0_21 = arith.constant 0 : index
      %18 = memref.load %arg9[%c0_21] : memref<1xi32, #tpu.memory_space<smem>>
      %c0_i32_22 = arith.constant 0 : i32
      %19 = arith.cmpi eq, %18, %c0_i32_22 : i32
      %20 = arith.extui %19 : i1 to i32
      %c0_i32_23 = arith.constant 0 : i32
      %21 = arith.cmpi ne, %20, %c0_i32_23 : i32
      scf.if %21 {
        %c0_24 = arith.constant 0 : index
        %c0_25 = arith.constant 0 : index
        %22 = vector.load %arg6[%c0_24, %c0_25] : memref<33x128xf32, #tpu.memory_space<vmem>>, vector<33x128xf32>
        %c0_26 = arith.constant 0 : index
        %c0_27 = arith.constant 0 : index
        %23 = vector.load %arg7[%c0_26, %c0_27] : memref<33x128xf32, #tpu.memory_space<vmem>>, vector<33x128xf32>
        %c0_28 = arith.constant 0 : index
        %24 = memref.load %arg8[%c0_28] : memref<1xf32, #tpu.memory_space<smem>>
        %cst_29 = arith.constant dense<0.000000e+00> : vector<33x128xf32>
        %25 = tpu.matmul %14, %23, %cst_29 {dimension_numbers = #tpu.dot_dimension_numbers<[1], [0], [0], [1], [0, 0, 1, 1], [], []>} : vector<33x33xf32>, vector<33x128xf32>, vector<33x128xf32> -> vector<33x128xf32>
        %26 = arith.addf %25, %5 : vector<33x128xf32>
        %cst_30 = arith.constant 0.000000e+00 : f32
        %27 = vector.broadcast %cst_30 : f32 to vector<33x128xf32>
        %28 = arith.maximumf %27, %26 : vector<33x128xf32>
        %29 = arith.addf %25, %7 : vector<33x128xf32>
        %cst_31 = arith.constant 0.000000e+00 : f32
        %30 = vector.broadcast %cst_31 : f32 to vector<33x128xf32>
        %31 = arith.minimumf %30, %29 : vector<33x128xf32>
        %32 = arith.addf %28, %31 : vector<33x128xf32>
        %cst_32 = arith.constant 4.000000e+00 : f32
        %33 = arith.mulf %cst_32, %24 : f32
        %34 = arith.mulf %33, %24 : f32
        %cst_33 = arith.constant 1.000000e+00 : f32
        %35 = arith.addf %cst_33, %34 : f32
        %36 = math.sqrt %35 : f32
        %cst_34 = arith.constant 1.000000e+00 : f32
        %37 = arith.addf %cst_34, %36 : f32
        %cst_35 = arith.constant 5.000000e-01 : f32
        %38 = arith.mulf %37, %cst_35 : f32
        %cst_36 = arith.constant 1.000000e+00 : f32
        %39 = arith.subf %24, %cst_36 : f32
        %40 = arith.divf %39, %38 : f32
        %41 = arith.subf %32, %22 : vector<33x128xf32>
        %42 = vector.broadcast %40 : f32 to vector<33x128xf32>
        %43 = arith.mulf %42, %41 : vector<33x128xf32>
        %44 = arith.addf %32, %43 : vector<33x128xf32>
        %c0_37 = arith.constant 0 : index
        %c0_38 = arith.constant 0 : index
        %45 = vector.load %arg7[%c0_37, %c0_38] : memref<33x128xf32, #tpu.memory_space<vmem>>, vector<33x128xf32>
        tpu.vector_store %arg7[%c0_37, %c0_38], %44 {strides = array<i32>} : memref<33x128xf32, #tpu.memory_space<vmem>>, vector<33x128xf32>,
        %c0_39 = arith.constant 0 : index
        %c0_40 = arith.constant 0 : index
        %46 = vector.load %arg6[%c0_39, %c0_40] : memref<33x128xf32, #tpu.memory_space<vmem>>, vector<33x128xf32>
        tpu.vector_store %arg6[%c0_39, %c0_40], %32 {strides = array<i32>} : memref<33x128xf32, #tpu.memory_space<vmem>>, vector<33x128xf32>,
        %c0_41 = arith.constant 0 : index
        %47 = memref.load %arg8[%c0_41] : memref<1xf32, #tpu.memory_space<smem>>
        memref.store %38, %arg8[%c0_41] : memref<1xf32, #tpu.memory_space<smem>>
        %c4_i32 = arith.constant 4 : i32
        %c0_i32_42 = arith.constant 0 : i32
        %48 = arith.cmpi eq, %c4_i32, %c0_i32_42 : i32
        %c1_i32_43 = arith.constant 1 : i32
        %49 = arith.select %48, %c1_i32_43, %c4_i32 : i32
        %50 = arith.remsi %arg10, %49 : i32
        %c0_i32_44 = arith.constant 0 : i32
        %51 = arith.cmpi ne, %50, %c0_i32_44 : i32
        %c0_i32_45 = arith.constant 0 : i32
        %52 = arith.cmpi slt, %50, %c0_i32_45 : i32
        %c0_i32_46 = arith.constant 0 : i32
        %53 = arith.cmpi slt, %49, %c0_i32_46 : i32
        %54 = arith.xori %52, %53 : i1
        %55 = arith.andi %54, %51 : i1
        %56 = arith.addi %50, %49 : i32
        %57 = arith.select %55, %56, %50 : i32
        %c0_i32_47 = arith.constant 0 : i32
        %58 = arith.cmpi eq, %57, %c0_i32_47 : i32
        %59 = arith.extui %58 : i1 to i32
        %c0_i32_48 = arith.constant 0 : i32
        %60 = arith.cmpi ne, %59, %c0_i32_48 : i32
        scf.if %60 {
          %c0_i32_49 = arith.constant 0 : i32
          %61 = arith.cmpi eq, %arg10, %c0_i32_49 : i32
          %cst_50 = arith.constant 1.600000e+01 : f32
          %cst_51 = arith.constant 3.300000e+01 : f32
          %62 = arith.select %61, %cst_50, %cst_51 : f32
          %63 = arith.mulf %41, %41 : vector<33x128xf32>
          %64 = vector.shape_cast %63 : vector<33x128xf32> to vector<1x33x128xf32>
          %cst_52 = arith.constant dense<0.000000e+00> : vector<1xf32>
          %65 = vector.multi_reduction <add>, %64, %cst_52 [1, 2] : vector<1x33x128xf32> to vector<1xf32>
          %66 = vector.shape_cast %65 : vector<1xf32> to vector<1x1x1xf32>
          %67 = vector.extract %66[0, 0, 0] : f32 from vector<1x1x1xf32>
          %68 = math.sqrt %67 : f32
          %69 = arith.divf %68, %62 : f32
          %cst_53 = arith.constant 9.99999974E-6 : f32
          %70 = arith.cmpf olt, %69, %cst_53 : f32
          %71 = arith.extui %70 : i1 to i32
          %c0_54 = arith.constant 0 : index
          %72 = memref.load %arg9[%c0_54] : memref<1xi32, #tpu.memory_space<smem>>
          memref.store %71, %arg9[%c0_54] : memref<1xi32, #tpu.memory_space<smem>>
        } else {
        }
      } else {
      }
    }
    %c100_i32_16 = arith.constant 100 : i32
    %c0_17 = arith.constant 0 : index
    %c0_18 = arith.constant 0 : index
    %16 = vector.load %arg6[%c0_17, %c0_18] : memref<33x128xf32, #tpu.memory_space<vmem>>, vector<33x128xf32>
    %c0_19 = arith.constant 0 : index
    %c0_20 = arith.constant 0 : index
    %17 = vector.load %arg5[%c0_19, %c0_20] : memref<33x128xf32, #tpu.memory_space<vmem>>, vector<33x128xf32>
    tpu.vector_store %arg5[%c0_19, %c0_20], %16 {strides = array<i32>} : memref<33x128xf32, #tpu.memory_space<vmem>>, vector<33x128xf32>,
    return
  }
  func.func @transform_0(%arg0: i32) -> i32 {
    %c0_i32 = arith.constant 0 : i32
    %c0_i32_0 = arith.constant 0 : i32
    return %c0_i32 : i32
  }
  func.func @transform_1(%arg0: i32) -> (i32, i32) {
    %c0_i32 = arith.constant 0 : i32
    %c0_i32_0 = arith.constant 0 : i32
    %c0_i32_1 = arith.constant 0 : i32
    return %c0_i32, %c0_i32_0 : i32, i32
  }
  func.func @transform_2(%arg0: i32) -> (i32, i32) {
    %c0_i32 = arith.constant 0 : i32
    %c0_i32_0 = arith.constant 0 : i32
    %c0_i32_1 = arith.constant 0 : i32
    return %c0_i32, %c0_i32_0 : i32, i32
  }
  func.func @transform_3(%arg0: i32) -> (i32, i32) {
    %c0_i32 = arith.constant 0 : i32
    %c0_i32_0 = arith.constant 0 : i32
    return %c0_i32, %arg0 : i32, i32
  }
  func.func @transform_4(%arg0: i32) -> (i32, i32) {
    %c0_i32 = arith.constant 0 : i32
    %c0_i32_0 = arith.constant 0 : i32
    return %c0_i32, %arg0 : i32, i32
  }
}

module attributes {stable_mosaic.version = 11 : i64} {
  func.func @_fista_pass2_kernel(%arg0: i32, %arg1: memref<8x33xf32, #tpu.memory_space<vmem>>, %arg2: memref<33x33xf32, #tpu.memory_space<vmem>>, %arg3: memref<8x33xf32, #tpu.memory_space<vmem>>, %arg4: memref<8x128xf32, #tpu.memory_space<vmem>>, %arg5: memref<33x128xf32, #tpu.memory_space<vmem>>, %arg6: memref<33x128xf32, #tpu.memory_space<vmem>>, %arg7: memref<8x128xf32, #tpu.memory_space<vmem>>, %arg8: memref<33x128xf32, #tpu.memory_space<vmem>>, %arg9: memref<33x128xf32, #tpu.memory_space<vmem>>, %arg10: memref<1xf32, #tpu.memory_space<smem>>, %arg11: memref<1xi32, #tpu.memory_space<smem>>) attributes {dimension_semantics = [#tpu.dimension_semantics<parallel>], iteration_bounds = array<i64: 1>, scalar_prefetch = 0 : i64, scratch_operands = 4 : i64, tpu.core_type = #tpu.core_type<tc>, window_params = [{pipeline_mode = #tpu.pipeline_mode<synchronous>, transform_indices = @transform_0, window_bounds = array<i64: 8, 33>}, {pipeline_mode = #tpu.pipeline_mode<synchronous>, transform_indices = @transform_1, window_bounds = array<i64: 33, 33>}, {pipeline_mode = #tpu.pipeline_mode<synchronous>, transform_indices = @transform_2, window_bounds = array<i64: 8, 33>}, {transform_indices = @transform_3, window_bounds = array<i64: 8, 128>}, {transform_indices = @transform_4, window_bounds = array<i64: 33, 128>}, {transform_indices = @transform_5, window_bounds = array<i64: 33, 128>}, {transform_indices = @transform_6, window_bounds = array<i64: 8, 128>}]} {
    %c0 = arith.constant 0 : index
    %c0_0 = arith.constant 0 : index
    %0 = vector.load %arg1[%c0, %c0_0] : memref<8x33xf32, #tpu.memory_space<vmem>>, vector<8x33xf32>
    %c0_1 = arith.constant 0 : index
    %c0_2 = arith.constant 0 : index
    %1 = vector.load %arg4[%c0_1, %c0_2] : memref<8x128xf32, #tpu.memory_space<vmem>>, vector<8x128xf32>
    %cst = arith.constant dense<0.000000e+00> : vector<33x128xf32>
    %2 = tpu.matmul %0, %1, %cst {dimension_numbers = #tpu.dot_dimension_numbers<[0], [0], [1], [1], [0, 1, 1, 1], [], []>} : vector<8x33xf32>, vector<8x128xf32>, vector<33x128xf32> -> vector<33x128xf32>
    %c0_3 = arith.constant 0 : index
    %c0_4 = arith.constant 0 : index
    %3 = vector.load %arg5[%c0_3, %c0_4] : memref<33x128xf32, #tpu.memory_space<vmem>>, vector<33x128xf32>
    %4 = arith.subf %2, %3 : vector<33x128xf32>
    %5 = arith.addf %2, %3 : vector<33x128xf32>
    %cst_5 = arith.constant 0.000000e+00 : f32
    %6 = vector.broadcast %cst_5 : f32 to vector<33x128xf32>
    %c0_6 = arith.constant 0 : index
    %c0_7 = arith.constant 0 : index
    %7 = vector.load %arg8[%c0_6, %c0_7] : memref<33x128xf32, #tpu.memory_space<vmem>>, vector<33x128xf32>
    tpu.vector_store %arg8[%c0_6, %c0_7], %6 {strides = array<i32>} : memref<33x128xf32, #tpu.memory_space<vmem>>, vector<33x128xf32>,
    %cst_8 = arith.constant 0.000000e+00 : f32
    %8 = vector.broadcast %cst_8 : f32 to vector<33x128xf32>
    %c0_9 = arith.constant 0 : index
    %c0_10 = arith.constant 0 : index
    %9 = vector.load %arg9[%c0_9, %c0_10] : memref<33x128xf32, #tpu.memory_space<vmem>>, vector<33x128xf32>
    tpu.vector_store %arg9[%c0_9, %c0_10], %8 {strides = array<i32>} : memref<33x128xf32, #tpu.memory_space<vmem>>, vector<33x128xf32>,
    %cst_11 = arith.constant 1.000000e+00 : f32
    %c0_12 = arith.constant 0 : index
    %10 = memref.load %arg10[%c0_12] : memref<1xf32, #tpu.memory_space<smem>>
    memref.store %cst_11, %arg10[%c0_12] : memref<1xf32, #tpu.memory_space<smem>>
    %c0_i32 = arith.constant 0 : i32
    %c0_13 = arith.constant 0 : index
    %11 = memref.load %arg11[%c0_13] : memref<1xi32, #tpu.memory_space<smem>>
    memref.store %c0_i32, %arg11[%c0_13] : memref<1xi32, #tpu.memory_space<smem>>
    %c0_14 = arith.constant 0 : index
    %c0_15 = arith.constant 0 : index
    %12 = vector.load %arg2[%c0_14, %c0_15] : memref<33x33xf32, #tpu.memory_space<vmem>>, vector<33x33xf32>
    %c0_i32_16 = arith.constant 0 : i32
    %c100_i32 = arith.constant 100 : i32
    %13 = arith.addi %c0_i32_16, %c100_i32 : i32
    %c1_i32 = arith.constant 1 : i32
    scf.for %arg12 = %c0_i32_16 to %13 step %c1_i32  : i32 {
      %c0_27 = arith.constant 0 : index
      %19 = memref.load %arg11[%c0_27] : memref<1xi32, #tpu.memory_space<smem>>
      %c0_i32_28 = arith.constant 0 : i32
      %20 = arith.cmpi eq, %19, %c0_i32_28 : i32
      %21 = arith.extui %20 : i1 to i32
      %c0_i32_29 = arith.constant 0 : i32
      %22 = arith.cmpi ne, %21, %c0_i32_29 : i32
      scf.if %22 {
        %c0_30 = arith.constant 0 : index
        %c0_31 = arith.constant 0 : index
        %23 = vector.load %arg8[%c0_30, %c0_31] : memref<33x128xf32, #tpu.memory_space<vmem>>, vector<33x128xf32>
        %c0_32 = arith.constant 0 : index
        %c0_33 = arith.constant 0 : index
        %24 = vector.load %arg9[%c0_32, %c0_33] : memref<33x128xf32, #tpu.memory_space<vmem>>, vector<33x128xf32>
        %c0_34 = arith.constant 0 : index
        %25 = memref.load %arg10[%c0_34] : memref<1xf32, #tpu.memory_space<smem>>
        %cst_35 = arith.constant dense<0.000000e+00> : vector<33x128xf32>
        %26 = tpu.matmul %12, %24, %cst_35 {dimension_numbers = #tpu.dot_dimension_numbers<[1], [0], [0], [1], [0, 0, 1, 1], [], []>} : vector<33x33xf32>, vector<33x128xf32>, vector<33x128xf32> -> vector<33x128xf32>
        %27 = arith.addf %26, %4 : vector<33x128xf32>
        %cst_36 = arith.constant 0.000000e+00 : f32
        %28 = vector.broadcast %cst_36 : f32 to vector<33x128xf32>
        %29 = arith.maximumf %28, %27 : vector<33x128xf32>
        %30 = arith.addf %26, %5 : vector<33x128xf32>
        %cst_37 = arith.constant 0.000000e+00 : f32
        %31 = vector.broadcast %cst_37 : f32 to vector<33x128xf32>
        %32 = arith.minimumf %31, %30 : vector<33x128xf32>
        %33 = arith.addf %29, %32 : vector<33x128xf32>
        %cst_38 = arith.constant 4.000000e+00 : f32
        %34 = arith.mulf %cst_38, %25 : f32
        %35 = arith.mulf %34, %25 : f32
        %cst_39 = arith.constant 1.000000e+00 : f32
        %36 = arith.addf %cst_39, %35 : f32
        %37 = math.sqrt %36 : f32
        %cst_40 = arith.constant 1.000000e+00 : f32
        %38 = arith.addf %cst_40, %37 : f32
        %cst_41 = arith.constant 5.000000e-01 : f32
        %39 = arith.mulf %38, %cst_41 : f32
        %cst_42 = arith.constant 1.000000e+00 : f32
        %40 = arith.subf %25, %cst_42 : f32
        %41 = arith.divf %40, %39 : f32
        %42 = arith.subf %33, %23 : vector<33x128xf32>
        %43 = vector.broadcast %41 : f32 to vector<33x128xf32>
        %44 = arith.mulf %43, %42 : vector<33x128xf32>
        %45 = arith.addf %33, %44 : vector<33x128xf32>
        %c0_43 = arith.constant 0 : index
        %c0_44 = arith.constant 0 : index
        %46 = vector.load %arg9[%c0_43, %c0_44] : memref<33x128xf32, #tpu.memory_space<vmem>>, vector<33x128xf32>
        tpu.vector_store %arg9[%c0_43, %c0_44], %45 {strides = array<i32>} : memref<33x128xf32, #tpu.memory_space<vmem>>, vector<33x128xf32>,
        %c0_45 = arith.constant 0 : index
        %c0_46 = arith.constant 0 : index
        %47 = vector.load %arg8[%c0_45, %c0_46] : memref<33x128xf32, #tpu.memory_space<vmem>>, vector<33x128xf32>
        tpu.vector_store %arg8[%c0_45, %c0_46], %33 {strides = array<i32>} : memref<33x128xf32, #tpu.memory_space<vmem>>, vector<33x128xf32>,
        %c0_47 = arith.constant 0 : index
        %48 = memref.load %arg10[%c0_47] : memref<1xf32, #tpu.memory_space<smem>>
        memref.store %39, %arg10[%c0_47] : memref<1xf32, #tpu.memory_space<smem>>
        %c4_i32 = arith.constant 4 : i32
        %c0_i32_48 = arith.constant 0 : i32
        %49 = arith.cmpi eq, %c4_i32, %c0_i32_48 : i32
        %c1_i32_49 = arith.constant 1 : i32
        %50 = arith.select %49, %c1_i32_49, %c4_i32 : i32
        %51 = arith.remsi %arg12, %50 : i32
        %c0_i32_50 = arith.constant 0 : i32
        %52 = arith.cmpi ne, %51, %c0_i32_50 : i32
        %c0_i32_51 = arith.constant 0 : i32
        %53 = arith.cmpi slt, %51, %c0_i32_51 : i32
        %c0_i32_52 = arith.constant 0 : i32
        %54 = arith.cmpi slt, %50, %c0_i32_52 : i32
        %55 = arith.xori %53, %54 : i1
        %56 = arith.andi %55, %52 : i1
        %57 = arith.addi %51, %50 : i32
        %58 = arith.select %56, %57, %51 : i32
        %c0_i32_53 = arith.constant 0 : i32
        %59 = arith.cmpi eq, %58, %c0_i32_53 : i32
        %60 = arith.extui %59 : i1 to i32
        %c0_i32_54 = arith.constant 0 : i32
        %61 = arith.cmpi ne, %60, %c0_i32_54 : i32
        scf.if %61 {
          %c0_i32_55 = arith.constant 0 : i32
          %62 = arith.cmpi eq, %arg12, %c0_i32_55 : i32
          %cst_56 = arith.constant 1.600000e+01 : f32
          %cst_57 = arith.constant 3.300000e+01 : f32
          %63 = arith.select %62, %cst_56, %cst_57 : f32
          %64 = arith.mulf %42, %42 : vector<33x128xf32>
          %65 = vector.shape_cast %64 : vector<33x128xf32> to vector<1x33x128xf32>
          %cst_58 = arith.constant dense<0.000000e+00> : vector<1xf32>
          %66 = vector.multi_reduction <add>, %65, %cst_58 [1, 2] : vector<1x33x128xf32> to vector<1xf32>
          %67 = vector.shape_cast %66 : vector<1xf32> to vector<1x1x1xf32>
          %68 = vector.extract %67[0, 0, 0] : f32 from vector<1x1x1xf32>
          %69 = math.sqrt %68 : f32
          %70 = arith.divf %69, %63 : f32
          %cst_59 = arith.constant 9.99999974E-6 : f32
          %71 = arith.cmpf olt, %70, %cst_59 : f32
          %72 = arith.extui %71 : i1 to i32
          %c0_60 = arith.constant 0 : index
          %73 = memref.load %arg11[%c0_60] : memref<1xi32, #tpu.memory_space<smem>>
          memref.store %72, %arg11[%c0_60] : memref<1xi32, #tpu.memory_space<smem>>
        } else {
        }
      } else {
      }
    }
    %c100_i32_17 = arith.constant 100 : i32
    %c0_18 = arith.constant 0 : index
    %c0_19 = arith.constant 0 : index
    %14 = vector.load %arg8[%c0_18, %c0_19] : memref<33x128xf32, #tpu.memory_space<vmem>>, vector<33x128xf32>
    %c0_20 = arith.constant 0 : index
    %c0_21 = arith.constant 0 : index
    %15 = vector.load %arg6[%c0_20, %c0_21] : memref<33x128xf32, #tpu.memory_space<vmem>>, vector<33x128xf32>
    tpu.vector_store %arg6[%c0_20, %c0_21], %14 {strides = array<i32>} : memref<33x128xf32, #tpu.memory_space<vmem>>, vector<33x128xf32>,
    %c0_22 = arith.constant 0 : index
    %c0_23 = arith.constant 0 : index
    %16 = vector.load %arg3[%c0_22, %c0_23] : memref<8x33xf32, #tpu.memory_space<vmem>>, vector<8x33xf32>
    %cst_24 = arith.constant dense<0.000000e+00> : vector<8x128xf32>
    %17 = tpu.matmul %16, %14, %cst_24 {dimension_numbers = #tpu.dot_dimension_numbers<[1], [0], [0], [1], [0, 0, 1, 1], [], []>} : vector<8x33xf32>, vector<33x128xf32>, vector<8x128xf32> -> vector<8x128xf32>
    %c0_25 = arith.constant 0 : index
    %c0_26 = arith.constant 0 : index
    %18 = vector.load %arg7[%c0_25, %c0_26] : memref<8x128xf32, #tpu.memory_space<vmem>>, vector<8x128xf32>
    tpu.vector_store %arg7[%c0_25, %c0_26], %17 {strides = array<i32>} : memref<8x128xf32, #tpu.memory_space<vmem>>, vector<8x128xf32>,
    return
  }
  func.func @transform_0(%arg0: i32) -> (i32, i32) {
    %c0_i32 = arith.constant 0 : i32
    %c0_i32_0 = arith.constant 0 : i32
    %c0_i32_1 = arith.constant 0 : i32
    return %c0_i32, %c0_i32_0 : i32, i32
  }
  func.func @transform_1(%arg0: i32) -> (i32, i32) {
    %c0_i32 = arith.constant 0 : i32
    %c0_i32_0 = arith.constant 0 : i32
    %c0_i32_1 = arith.constant 0 : i32
    return %c0_i32, %c0_i32_0 : i32, i32
  }
  func.func @transform_2(%arg0: i32) -> (i32, i32) {
    %c0_i32 = arith.constant 0 : i32
    %c0_i32_0 = arith.constant 0 : i32
    %c0_i32_1 = arith.constant 0 : i32
    return %c0_i32, %c0_i32_0 : i32, i32
  }
  func.func @transform_3(%arg0: i32) -> (i32, i32) {
    %c0_i32 = arith.constant 0 : i32
    %c0_i32_0 = arith.constant 0 : i32
    return %c0_i32, %arg0 : i32, i32
  }
  func.func @transform_4(%arg0: i32) -> (i32, i32) {
    %c0_i32 = arith.constant 0 : i32
    %c0_i32_0 = arith.constant 0 : i32
    return %c0_i32, %arg0 : i32, i32
  }
  func.func @transform_5(%arg0: i32) -> (i32, i32) {
    %c0_i32 = arith.constant 0 : i32
    %c0_i32_0 = arith.constant 0 : i32
    return %c0_i32, %arg0 : i32, i32
  }
  func.func @transform_6(%arg0: i32) -> (i32, i32) {
    %c0_i32 = arith.constant 0 : i32
    %c0_i32_0 = arith.constant 0 : i32
    return %c0_i32, %arg0 : i32, i32
  }
}

</mosaic_0001>

<llo_original>
// kernel: dyan_encoder_forward.2
$region0: #{dyan_encoder_forward.2}
  #allocation0 [shape = 'u32[]', space=smem, size = 0x4, offset = 0x4, fixed_abs, tag = 'smem constant byte address 0x4 - core index']
  #allocation1 [shape = 'u32[144,128]{1,0:T(1,128)}', space=vmem, size = 0x12000, scoped, tag = 'internal scratch']
  #allocation2 [shape = 'f32[33,128]{1,0:T(8,128)}', space=vmem, size = 0x5000, scoped, tag = 'scratch operand']
  #allocation3 [shape = 'f32[33,128]{1,0:T(8,128)}', space=vmem, size = 0x5000, scoped, tag = 'scratch operand']
  #allocation4 [shape = 'f32[1]{0:T(128)}', space=smem, size = 0x200, scoped, tag = 'scratch operand']
  #allocation5 [shape = 's32[1]{0:T(128)}', space=smem, size = 0x200, scoped, tag = 'scratch operand']
  #allocation6 [shape = 'f32[1]{0:T(128)S(6)}', space=smem, size = 0x200, scoped, tag = 'scoped memory for dyan_encoder_forward.2']
  %s0 = inlined_call_operand.<no memory space> [shape: f32[1], index: 0, kind: input, shape index: {}]
  %s1 = inlined_call_operand.vmem [shape: f32[8,33], index: 1, kind: input, shape index: {}]
  %s2 = inlined_call_operand.vmem [shape: f32[33,33], index: 2, kind: input, shape index: {}]
  %s3 = inlined_call_operand.vmem [shape: f32[8,128], index: 3, kind: input, shape index: {}]
  %s4 = inlined_call_operand.vmem [shape: f32[33,128], index: 4, kind: output, shape index: {}]
  %s5 = sld [smem:[#allocation0]]
  $region41: #{dyan_encoder_forward.2} parent=0
    _
  %s7 = ssub.s32 1, %s5
  %s8 = scalar_select 0, %s7, %s5
  %9 = sst [smem:[#allocation6]] %s0
  // Predicated region
  $region2: #{dyan_encoder_forward.2} parent=0 // pred_check
    _
  $region3: #{dyan_encoder_forward.2} parent=0 // pred_check_branch
    %11 = sbr.rel (0) target = $region5
  $region4: #{dyan_encoder_forward.2} parent=0 // pred_region
    _
  $region5: #{dyan_encoder_forward.2} parent=0 // pred_fallthru
    _
  // Predicated region
  $region6: #{dyan_encoder_forward.2} parent=0 // pred_check
    _
  $region7: #{dyan_encoder_forward.2} parent=0 // pred_check_branch
    %13 = sbr.rel (0) target = $region9
  $region8: #{dyan_encoder_forward.2} parent=0 // pred_region
    _
  $region9: #{dyan_encoder_forward.2} parent=0 // pred_fallthru
    _
  // Predicated region
  $region10: #{dyan_encoder_forward.2} parent=0 // pred_check
    _
  $region11: #{dyan_encoder_forward.2} parent=0 // pred_check_branch
    %15 = sbr.rel (0) target = $region13
  $region12: #{dyan_encoder_forward.2} parent=0 // pred_region
    _
  $region13: #{dyan_encoder_forward.2} parent=0 // pred_fallthru
    _
  // Predicated region
  $region14: #{dyan_encoder_forward.2} parent=0 // pred_check
    _
  $region15: #{dyan_encoder_forward.2} parent=0 // pred_check_branch
    %17 = sbr.rel (0) target = $region17
  $region16: #{dyan_encoder_forward.2} parent=0 // pred_region
    _
  $region17: #{dyan_encoder_forward.2} parent=0 // pred_fallthru
    _
  %v18 = vld [vmem:[%s1] sm:$0xff]
  %v19 = vld [vmem:[%s3] sm:$0xff]
  %20 = vxpose.xlu0.b32.start [1/16] %v18, 128
  %21 = vxpose.xlu0.b32.cont [2/16] 0.0, 128
  %22 = vxpose.xlu0.b32.cont [3/16] 0.0, 128
  %23 = vxpose.xlu0.b32.cont [4/16] 0.0, 128
  %24 = vxpose.xlu0.b32.cont [5/16] 0.0, 128
  %25 = vxpose.xlu0.b32.cont [6/16] 0.0, 128
  %26 = vxpose.xlu0.b32.cont [7/16] 0.0, 128
  %27 = vxpose.xlu0.b32.cont [8/16] 0.0, 128
  %28 = vxpose.xlu0.b32.cont [9/16] 0.0, 128
  %29 = vxpose.xlu0.b32.cont [10/16] 0.0, 128
  %30 = vxpose.xlu0.b32.cont [11/16] 0.0, 128
  %31 = vxpose.xlu0.b32.cont [12/16] 0.0, 128
  %32 = vxpose.xlu0.b32.cont [13/16] 0.0, 128
  %33 = vxpose.xlu0.b32.cont [14/16] 0.0, 128
  %34 = vxpose.xlu0.b32.cont [15/16] 0.0, 128
  %35 = vxpose.xlu0.b32.end [16/16] 0.0, 128
  %v36 = vpop.trf.xlu0
  %v37 = vpop.trf.xlu0
  %v38 = vpop.trf.xlu0
  %v39 = vpop.trf.xlu0
  %v40 = vpop.trf.xlu0
  %v41 = vpop.trf.xlu0
  %v42 = vpop.trf.xlu0
  %v43 = vpop.trf.xlu0
  %v44 = vpop.trf.xlu0
  %v45 = vpop.trf.xlu0
  %v46 = vpop.trf.xlu0
  %v47 = vpop.trf.xlu0
  %v48 = vpop.trf.xlu0
  %v49 = vpop.trf.xlu0
  %v50 = vpop.trf.xlu0
  %v51 = vpop.trf.xlu0
  %vm52 = vcmask 64512
  %v54 = vsel %vm52, %v36, 0
  %v57 = vsel %vm52, %v37, 0
  %v60 = vsel %vm52, %v38, 0
  %v63 = vsel %vm52, %v39, 0
  %v66 = vsel %vm52, %v40, 0
  %68 = vmatprep.subr.mxu0 0.0
  %69 = vmatpush1.msra.mxu0 %v19
  %70 = vmatprep.subr.mxu0 0.0
  %71 = vmatpush1.msra.mxu0 0.0
  %72 = vmatprep.subr.mxu0 0.0
  %73 = vmatpush1.msra.mxu0 0.0
  %74 = vmatprep.subr.mxu0 0.0
  %75 = vmatpush1.msra.mxu0 0.0
  %76 = vmatprep.subr.mxu0 0.0
  %77 = vmatpush1.msra.mxu0 0.0
  %78 = vmatprep.subr.mxu0 0.0
  %79 = vmatpush1.msra.mxu0 0.0
  %80 = vmatprep.subr.mxu0 0.0
  %81 = vmatpush1.msra.mxu0 0.0
  %82 = vmatprep.subr.mxu0 0.0
  %83 = vmatpush1.msra.mxu0 0.0
  %84 = vmatprep.subr.mxu0 0.0
  %85 = vmatpush1.msra.mxu0 0.0
  %86 = vmatprep.subr.mxu0 0.0
  %87 = vmatpush1.msra.mxu0 0.0
  %88 = vmatprep.subr.mxu0 0.0
  %89 = vmatpush1.msra.mxu0 0.0
  %90 = vmatprep.subr.mxu0 0.0
  %91 = vmatpush1.msra.mxu0 0.0
  %92 = vmatprep.subr.mxu0 0.0
  %93 = vmatpush1.msra.mxu0 0.0
  %94 = vmatprep.subr.mxu0 0.0
  %95 = vmatpush1.msra.mxu0 0.0
  %96 = vmatprep.subr.mxu0 0.0
  %97 = vmatpush1.msra.mxu0 0.0
  %98 = vmatprep.subr.mxu0 0.0
  %99 = vmatpush1.msra.mxu0 0.0
  %100 = vmatprep.subr.mxu0 0.0
  %101 = vmatpush1.msra.mxu0 0.0
  %102 = vmatprep.subr.mxu0 0.0
  %103 = vmatpush1.msra.mxu0 0.0
  %104 = vmatprep.subr.mxu0 0.0
  %105 = vmatpush1.msra.mxu0 0.0
  %106 = vmatprep.subr.mxu0 0.0
  %107 = vmatpush1.msra.mxu0 0.0
  %108 = vmatprep.subr.mxu0 0.0
  %109 = vmatpush1.msra.mxu0 0.0
  %110 = vmatprep.subr.mxu0 0.0
  %111 = vmatpush1.msra.mxu0 0.0
  %112 = vmatprep.subr.mxu0 0.0
  %113 = vmatpush1.msra.mxu0 0.0
  %114 = vmatprep.subr.mxu0 0.0
  %115 = vmatpush1.msra.mxu0 0.0
  %116 = vmatprep.subr.mxu0 0.0
  %117 = vmatpush1.msra.mxu0 0.0
  %118 = vmatprep.subr.mxu0 0.0
  %119 = vmatpush1.msra.mxu0 0.0
  %120 = vmatprep.subr.mxu0 0.0
  %121 = vmatpush1.msra.mxu0 0.0
  %122 = vmatprep.subr.mxu0 0.0
  %123 = vmatpush1.msra.mxu0 0.0
  %124 = vmatprep.subr.mxu0 0.0
  %125 = vmatpush1.msra.mxu0 0.0
  %126 = vmatprep.subr.mxu0 0.0
  %127 = vmatpush1.msra.mxu0 0.0
  %128 = vmatprep.subr.mxu0 0.0
  %129 = vmatpush1.msra.mxu0 0.0
  %130 = vmatprep.subr.mxu0 0.0
  %131 = vmatpush1.msra.mxu0 0.0
  %132 = vmatprep.mubr.f32.mxu0 0.0
  %133 = vmatmul.mubr.f32.gmra.mrb[0].mxu0 %v54
  %v134 = vpop.f32.mrb[0].mxu0
  %v135 = vadd.f32 0.0, %v134
  %v136 = vpop.f32.mrb[0].mxu0
  %137 = vmatprep.mubr.f32.mxu0 0.0
  %138 = vmatmul.mubr.f32.gmra.mrb[0].mxu0 %v57
  %v139 = vpop.f32.mrb[0].mxu0
  %v140 = vadd.f32 0.0, %v139
  %v141 = vpop.f32.mrb[0].mxu0
  %142 = vmatprep.mubr.f32.mxu0 0.0
  %143 = vmatmul.mubr.f32.gmra.mrb[0].mxu0 %v60
  %v144 = vpop.f32.mrb[0].mxu0
  %v145 = vadd.f32 0.0, %v144
  %v146 = vpop.f32.mrb[0].mxu0
  %147 = vmatprep.mubr.f32.mxu0 0.0
  %148 = vmatmul.mubr.f32.gmra.mrb[0].mxu0 %v63
  %v149 = vpop.f32.mrb[0].mxu0
  %v150 = vadd.f32 0.0, %v149
  %v151 = vpop.f32.mrb[0].mxu0
  %152 = vmatprep.mubr.f32.mxu0 0.0
  %153 = vmatmul.mubr.f32.gmra.mrb[0].mxu0 %v66
  %v154 = vpop.f32.mrb[0].mxu0
  %v155 = vadd.f32 0.0, %v154
  %v156 = vpop.f32.mrb[0].mxu0
  %157 = vdwg.mxu0
  %s158 = sld [smem:[#allocation6]]
  %v159 = vstv %s158
  %v160 = vsub.f32 %v135, %v159
  %v161 = vsub.f32 %v140, %v159
  %v162 = vsub.f32 %v145, %v159
  %v163 = vsub.f32 %v150, %v159
  %v164 = vsub.f32 %v155, %v159
  %v165 = vadd.f32 %v135, %v159
  %v166 = vadd.f32 %v140, %v159
  %v167 = vadd.f32 %v145, %v159
  %v168 = vadd.f32 %v150, %v159
  %v169 = vadd.f32 %v155, %v159
  %170 = vst [vmem:[#allocation2] sm:$0xff] 0.0
  %171 = vst [vmem:[#allocation2 + $0x8] sm:$0xff] 0.0
  %172 = vst [vmem:[#allocation2 + $0x10] sm:$0xff] 0.0
  %173 = vst [vmem:[#allocation2 + $0x18] sm:$0xff] 0.0
  %174 = vst [vmem:[#allocation2 + $0x20] sm:$0x1] 0.0
  %175 = vst [vmem:[#allocation3] sm:$0xff] 0.0
  %176 = vst [vmem:[#allocation3 + $0x8] sm:$0xff] 0.0
  %177 = vst [vmem:[#allocation3 + $0x10] sm:$0xff] 0.0
  %178 = vst [vmem:[#allocation3 + $0x18] sm:$0xff] 0.0
  %179 = vst [vmem:[#allocation3 + $0x20] sm:$0x1] 0.0
  %s180 = scalar_lea.smem [#allocation4], 0
  %181 = sst [smem:[%s180]] 1.0
  %s182 = scalar_lea.smem [#allocation5], 0
  %183 = sst [smem:[%s182]] 0
  %v184 = vld [vmem:[%s2] sm:$0xff]
  %v185 = vld [vmem:[%s2 + $0x8] sm:$0xff]
  %v186 = vld [vmem:[%s2 + $0x10] sm:$0xff]
  %v187 = vld [vmem:[%s2 + $0x18] sm:$0xff]
  %v188 = vld [vmem:[%s2 + $0x20] sm:$0x1]
  loop: start=0, step=1, limit=100
  $region18: #{dyan_encoder_forward.2} parent=0 // loop_pre_header
    _
  $region19: #{dyan_encoder_forward.2} parent=0 // loop_header
    %s190 = sphi 0, %s194
    %p191 = scmp.ge.s32.totalorder %s190, 100
  $region20: #{dyan_encoder_forward.2} parent=0 // loop_header_branch
    %193 = sbr.rel (%p191) target = $region24
  $region21: #{dyan_encoder_forward.2} parent=0 // loop_body
    %s195 = sld [smem:[#allocation5]]
    %p196 = scmp.eq.s32.totalorder %s195, 0
    // Predicated region
    $region25: #{dyan_encoder_forward.2} parent=21 // pred_check
      %p197 = pneg %p196
    $region26: #{dyan_encoder_forward.2} parent=21 // pred_check_branch
      %199 = sbr.rel (%p197) target = $region28
    $region27: #{dyan_encoder_forward.2} parent=21 // pred_region
      %v200 = vld [vmem:[#allocation2] sm:$0xff]
      %v201 = vld [vmem:[#allocation2 + $0x8] sm:$0xff]
      %v202 = vld [vmem:[#allocation2 + $0x10] sm:$0xff]
      %v203 = vld [vmem:[#allocation2 + $0x18] sm:$0xff]
      %v204 = vld [vmem:[#allocation2 + $0x20] sm:$0x1]
      %v205 = vld [vmem:[#allocation3] sm:$0xff]
      %v206 = vld [vmem:[#allocation3 + $0x8] sm:$0xff]
      %v207 = vld [vmem:[#allocation3 + $0x10] sm:$0xff]
      %v208 = vld [vmem:[#allocation3 + $0x18] sm:$0xff]
      %v209 = vld [vmem:[#allocation3 + $0x20] sm:$0x1]
      %s210 = sld [smem:[#allocation4]]
      %vm211 = vcmask 269312
      %v213 = vsel %vm211, %v184, 0
      %v216 = vsel %vm211, %v185, 0
      %v219 = vsel %vm211, %v186, 0
      %v222 = vsel %vm211, %v187, 0
      %v225 = vsel %vm211, %v188, 0
      %vm227 = vcmask 1040384
      %v229 = vsel %vm227, %v209, 0
      %231 = vmatprep.subr.mxu0 0.0
      %232 = vmatpush1.msra.mxu0 %v205
      %233 = vmatprep.subr.mxu0 0.0
      %234 = vmatpush1.msra.mxu0 %v206
      %235 = vmatprep.subr.mxu0 0.0
      %236 = vmatpush1.msra.mxu0 %v207
      %237 = vmatprep.subr.mxu0 0.0
      %238 = vmatpush1.msra.mxu0 %v208
      %239 = vmatprep.subr.mxu0 0.0
      %240 = vmatpush1.msra.mxu0 %v229
      %241 = vmatprep.subr.mxu0 0.0
      %242 = vmatpush1.msra.mxu0 0.0
      %243 = vmatprep.subr.mxu0 0.0
      %244 = vmatpush1.msra.mxu0 0.0
      %245 = vmatprep.subr.mxu0 0.0
      %246 = vmatpush1.msra.mxu0 0.0
      %247 = vmatprep.subr.mxu0 0.0
      %248 = vmatpush1.msra.mxu0 0.0
      %249 = vmatprep.subr.mxu0 0.0
      %250 = vmatpush1.msra.mxu0 0.0
      %251 = vmatprep.subr.mxu0 0.0
      %252 = vmatpush1.msra.mxu0 0.0
      %253 = vmatprep.subr.mxu0 0.0
      %254 = vmatpush1.msra.mxu0 0.0
      %255 = vmatprep.subr.mxu0 0.0
      %256 = vmatpush1.msra.mxu0 0.0
      %257 = vmatprep.subr.mxu0 0.0
      %258 = vmatpush1.msra.mxu0 0.0
      %259 = vmatprep.subr.mxu0 0.0
      %260 = vmatpush1.msra.mxu0 0.0
      %261 = vmatprep.subr.mxu0 0.0
      %262 = vmatpush1.msra.mxu0 0.0
      %263 = vmatprep.subr.mxu0 0.0
      %264 = vmatpush1.msra.mxu0 0.0
      %265 = vmatprep.subr.mxu0 0.0
      %266 = vmatpush1.msra.mxu0 0.0
      %267 = vmatprep.subr.mxu0 0.0
      %268 = vmatpush1.msra.mxu0 0.0
      %269 = vmatprep.subr.mxu0 0.0
      %270 = vmatpush1.msra.mxu0 0.0
      %271 = vmatprep.subr.mxu0 0.0
      %272 = vmatpush1.msra.mxu0 0.0
      %273 = vmatprep.subr.mxu0 0.0
      %274 = vmatpush1.msra.mxu0 0.0
      %275 = vmatprep.subr.mxu0 0.0
      %276 = vmatpush1.msra.mxu0 0.0
      %277 = vmatprep.subr.mxu0 0.0
      %278 = vmatpush1.msra.mxu0 0.0
      %279 = vmatprep.subr.mxu0 0.0
      %280 = vmatpush1.msra.mxu0 0.0
      %281 = vmatprep.subr.mxu0 0.0
      %282 = vmatpush1.msra.mxu0 0.0
      %283 = vmatprep.subr.mxu0 0.0
      %284 = vmatpush1.msra.mxu0 0.0
      %285 = vmatprep.subr.mxu0 0.0
      %286 = vmatpush1.msra.mxu0 0.0
      %287 = vmatprep.subr.mxu0 0.0
      %288 = vmatpush1.msra.mxu0 0.0
      %289 = vmatprep.subr.mxu0 0.0
      %290 = vmatpush1.msra.mxu0 0.0
      %291 = vmatprep.subr.mxu0 0.0
      %292 = vmatpush1.msra.mxu0 0.0
      %293 = vmatprep.subr.mxu0 0.0
      %294 = vmatpush1.msra.mxu0 0.0
      %295 = vmatprep.mubr.f32.mxu0 0.0
      %296 = vmatmul.mubr.f32.gmra.mrb[0].mxu0 %v213
      %v297 = vpop.f32.mrb[0].mxu0
      %v298 = vadd.f32 0.0, %v297
      %v299 = vpop.f32.mrb[0].mxu0
      %300 = vmatprep.mubr.f32.mxu0 0.0
      %301 = vmatmul.mubr.f32.gmra.mrb[0].mxu0 %v216
      %v302 = vpop.f32.mrb[0].mxu0
      %v303 = vadd.f32 0.0, %v302
      %v304 = vpop.f32.mrb[0].mxu0
      %305 = vmatprep.mubr.f32.mxu0 0.0
      %306 = vmatmul.mubr.f32.gmra.mrb[0].mxu0 %v219
      %v307 = vpop.f32.mrb[0].mxu0
      %v308 = vadd.f32 0.0, %v307
      %v309 = vpop.f32.mrb[0].mxu0
      %310 = vmatprep.mubr.f32.mxu0 0.0
      %311 = vmatmul.mubr.f32.gmra.mrb[0].mxu0 %v222
      %v312 = vpop.f32.mrb[0].mxu0
      %v313 = vadd.f32 0.0, %v312
      %v314 = vpop.f32.mrb[0].mxu0
      %315 = vmatprep.mubr.f32.mxu0 0.0
      %316 = vmatmul.mubr.f32.gmra.mrb[0].mxu0 %v225
      %v317 = vpop.f32.mrb[0].mxu0
      %v318 = vadd.f32 0.0, %v317
      %v319 = vpop.f32.mrb[0].mxu0
      %320 = vdwg.mxu0
      %v321 = vadd.f32 %v298, %v160
      %v322 = vadd.f32 %v303, %v161
      %v323 = vadd.f32 %v308, %v162
      %v324 = vadd.f32 %v313, %v163
      %v325 = vadd.f32 %v318, %v164
      %v326 = vmax.f32 %v321, 0.0
      %v327 = vmax.f32 %v322, 0.0
      %v328 = vmax.f32 %v323, 0.0
      %v329 = vmax.f32 %v324, 0.0
      %v330 = vmax.f32 %v325, 0.0
      %v331 = vadd.f32 %v298, %v165
      %v332 = vadd.f32 %v303, %v166
      %v333 = vadd.f32 %v308, %v167
      %v334 = vadd.f32 %v313, %v168
      %v335 = vadd.f32 %v318, %v169
      %v336 = vmin.f32 %v331, 0.0
      %v337 = vmin.f32 %v332, 0.0
      %v338 = vmin.f32 %v333, 0.0
      %v339 = vmin.f32 %v334, 0.0
      %v340 = vmin.f32 %v335, 0.0
      %v341 = vadd.f32 %v326, %v336
      %v342 = vadd.f32 %v327, %v337
      %v343 = vadd.f32 %v328, %v338
      %v344 = vadd.f32 %v329, %v339
      %v345 = vadd.f32 %v330, %v340
      %s346 = smul.f32 %s210, 4.0
      %s347 = smul.f32 %s346, %s210
      %s348 = sadd.f32 %s347, 1.0
      %v349 = vstv %s348
      %v350 = vrsqrt.pop %v349
      %v351 = vmul.f32 %v349, %v350
      %vm352 = vcmp.eq.f32.partialorder %v349, inf
      %v353 = vsel %vm352, %v349, %v351
      %vm354 = vcmp.eq.f32.partialorder %v349, 0.0
      %v355 = vand.u32 %v349, 2147483648
      %v356 = vsel %vm354, %v355, %v353
      %s357 = vtos %v356
      %s358 = sadd.f32 %s357, 1.0
      %s359 = smul.f32 %s358, 0.5
      %s360 = ssub.f32 %s210, 1.0
      %v361 = vstv %s359
      %v362 = vrcp.pop %v361
      %s363 = vtos %v362
      %s364 = smul.f32 %s360, %s363
      %v365 = vsub.f32 %v341, %v200
      %v366 = vsub.f32 %v342, %v201
      %v367 = vsub.f32 %v343, %v202
      %v368 = vsub.f32 %v344, %v203
      %v369 = vsub.f32 %v345, %v204
      %v370 = vstv %s364
      %v371 = vmul.f32 %v370, %v365
      %v372 = vmul.f32 %v370, %v366
      %v373 = vmul.f32 %v370, %v367
      %v374 = vmul.f32 %v370, %v368
      %v375 = vmul.f32 %v370, %v369
      %v376 = vadd.f32 %v341, %v371
      %v377 = vadd.f32 %v342, %v372
      %v378 = vadd.f32 %v343, %v373
      %v379 = vadd.f32 %v344, %v374
      %v380 = vadd.f32 %v345, %v375
      %381 = vst [vmem:[#allocation3] sm:$0xff] %v376
      %382 = vst [vmem:[#allocation3 + $0x8] sm:$0xff] %v377
      %383 = vst [vmem:[#allocation3 + $0x10] sm:$0xff] %v378
      %384 = vst [vmem:[#allocation3 + $0x18] sm:$0xff] %v379
      %385 = vst [vmem:[#allocation3 + $0x20] sm:$0x1] %v380
      %386 = vst [vmem:[#allocation2] sm:$0xff] %v341
      %387 = vst [vmem:[#allocation2 + $0x8] sm:$0xff] %v342
      %388 = vst [vmem:[#allocation2 + $0x10] sm:$0xff] %v343
      %389 = vst [vmem:[#allocation2 + $0x18] sm:$0xff] %v344
      %390 = vst [vmem:[#allocation2 + $0x20] sm:$0x1] %v345
      %391 = sst [smem:[%s180]] %s359
      %p392 = scmp.lt.s32.totalorder %s190, 0
      %s393 = ssub.s32 0, %s190
      %s394 = scalar_select %p392, %s393, %s190
      %s395 = sand.u32 %s394, 3
      %s396 = ssub.s32 0, %s395
      %s397 = scalar_select %p392, %s396, %s395
      %p398 = scmp.ne.s32.totalorder %s397, 0
      %p399 = scmp.lt.s32.totalorder %s397, 0
      %p400 = pnand %p399, %p398
      %p401 = pneg %p400
      %s402 = sadd.s32 %s397, 4
      %s403 = scalar_select %p401, %s402, %s397
      %p404 = scmp.eq.s32.totalorder %s403, 0
      // Predicated region
      $region29: #{dyan_encoder_forward.2} parent=27 // pred_check
        %p405 = pneg %p404
      $region30: #{dyan_encoder_forward.2} parent=27 // pred_check_branch
        %407 = sbr.rel (%p405) target = $region32
      $region31: #{dyan_encoder_forward.2} parent=27 // pred_region
        %p408 = scmp.eq.s32.totalorder %s190, 0
        %s409 = scalar_select %p408, 16.0, 33.0
        %v410 = vmul.f32 %v365, %v365
        %v411 = vmul.f32 %v366, %v366
        %v412 = vmul.f32 %v367, %v367
        %v413 = vmul.f32 %v368, %v368
        %v414 = vmul.f32 %v369, %v369
        %v415 = vadd.f32 %v410, %v411
        %v416 = vadd.f32 %v415, %v412
        %v417 = vadd.f32 %v416, %v413
        %v418 = vsel %vm227, %v414, 0.0
        %v419 = vadd.f32 %v417, %v418
        %420 = vadd.xlane.f32.xlu0 %v419
        %v421 = vpop.xlane.xlu0 %420
        %v422 = vrot.slane %v421, 4
        %v423 = vadd.f32 %v421, %v422
        %v424 = vrot.slane %v423, 2
        %v425 = vadd.f32 %v423, %v424
        %v426 = vrot.slane %v425, 1
        %v427 = vadd.f32 %v425, %v426
        %s428 = vtos %v427
        %v429 = vstv %s428
        %v430 = vrsqrt.pop %v429
        %v431 = vmul.f32 %v429, %v430
        %vm432 = vcmp.eq.f32.partialorder %v429, inf
        %v433 = vsel %vm432, %v429, %v431
        %vm434 = vcmp.eq.f32.partialorder %v429, 0.0
        %v435 = vand.u32 %v429, 2147483648
        %v436 = vsel %vm434, %v435, %v433
        %s437 = vtos %v436
        %v438 = vstv %s409
        %v439 = vrcp.pop %v438
        %s440 = vtos %v439
        %s441 = smul.f32 %s437, %s440
        %p442 = scmp.lt.f32.partialorder %s441, 1e-05
        %s443 = scalar_select %p442, 1, 0
        %444 = sst [smem:[%s182]] %s443
      $region32: #{dyan_encoder_forward.2} parent=27 // pred_fallthru
        _
    $region28: #{dyan_encoder_forward.2} parent=21 // pred_fallthru
      _
  $region22: #{dyan_encoder_forward.2} parent=0 // loop_footer
    %s194 = sadd.s32 1, %s190
  $region23: #{dyan_encoder_forward.2} parent=0 // loop_footer_branch
    %189 = sbr.rel target = $region19
  $region24: #{dyan_encoder_forward.2} parent=0 // loop_exit
    _
  %v445 = vld [vmem:[#allocation2] sm:$0xff]
  %v446 = vld [vmem:[#allocation2 + $0x8] sm:$0xff]
  %v447 = vld [vmem:[#allocation2 + $0x10] sm:$0xff]
  %v448 = vld [vmem:[#allocation2 + $0x18] sm:$0xff]
  %v449 = vld [vmem:[#allocation2 + $0x20] sm:$0x1]
  %450 = vst [vmem:[%s4] sm:$0xff] %v445
  %451 = vst [vmem:[%s4 + $0x8] sm:$0xff] %v446
  %452 = vst [vmem:[%s4 + $0x10] sm:$0xff] %v447
  %453 = vst [vmem:[%s4 + $0x18] sm:$0xff] %v448
  %454 = vst [vmem:[%s4 + $0x20] sm:$0x1] %v449
  // Predicated region
  $region33: #{dyan_encoder_forward.2} parent=0 // pred_check
    _
  $region34: #{dyan_encoder_forward.2} parent=0 // pred_check_branch
    %456 = sbr.rel (0) target = $region36
  $region35: #{dyan_encoder_forward.2} parent=0 // pred_region
    _
  $region36: #{dyan_encoder_forward.2} parent=0 // pred_fallthru
    _
  // Predicated region
  $region37: #{dyan_encoder_forward.2} parent=0 // pred_check
    _
  $region38: #{dyan_encoder_forward.2} parent=0 // pred_check_branch
    %458 = sbr.rel (0) target = $region40
  $region39: #{dyan_encoder_forward.2} parent=0 // pred_region
    _
  $region40: #{dyan_encoder_forward.2} parent=0 // pred_fallthru
    _

// kernel: dyan_encoder_forward.3
$region0: #{dyan_encoder_forward.3}
  #allocation0 [shape = 'u32[]', space=smem, size = 0x4, offset = 0x4, fixed_abs, tag = 'smem constant byte address 0x4 - core index']
  #allocation1 [shape = 'u32[144,128]{1,0:T(1,128)}', space=vmem, size = 0x12000, scoped, tag = 'internal scratch']
  #allocation2 [shape = 'f32[33,128]{1,0:T(8,128)}', space=vmem, size = 0x5000, scoped, tag = 'scratch operand']
  #allocation3 [shape = 'f32[33,128]{1,0:T(8,128)}', space=vmem, size = 0x5000, scoped, tag = 'scratch operand']
  #allocation4 [shape = 'f32[1]{0:T(128)}', space=smem, size = 0x200, scoped, tag = 'scratch operand']
  #allocation5 [shape = 's32[1]{0:T(128)}', space=smem, size = 0x200, scoped, tag = 'scratch operand']
  %s0 = inlined_call_operand.vmem [shape: f32[8,33], index: 0, kind: input, shape index: {}]
  %s1 = inlined_call_operand.vmem [shape: f32[33,33], index: 1, kind: input, shape index: {}]
  %s2 = inlined_call_operand.vmem [shape: f32[8,33], index: 2, kind: input, shape index: {}]
  %s3 = inlined_call_operand.vmem [shape: f32[8,128], index: 3, kind: input, shape index: {}]
  %s4 = inlined_call_operand.vmem [shape: f32[33,128], index: 4, kind: input, shape index: {}]
  %s5 = inlined_call_operand.vmem [shape: f32[33,128], index: 5, kind: output, shape index: {0}]
  %s6 = inlined_call_operand.vmem [shape: f32[8,128], index: 6, kind: output, shape index: {1}]
  %7 = xla_tuple %s5, %s6
  %s8 = sld [smem:[#allocation0]]
  $region53: #{dyan_encoder_forward.3} parent=0
    _
  %s10 = ssub.s32 1, %s8
  %s11 = scalar_select 0, %s10, %s8
  // Predicated region
  $region2: #{dyan_encoder_forward.3} parent=0 // pred_check
    _
  $region3: #{dyan_encoder_forward.3} parent=0 // pred_check_branch
    %13 = sbr.rel (0) target = $region5
  $region4: #{dyan_encoder_forward.3} parent=0 // pred_region
    _
  $region5: #{dyan_encoder_forward.3} parent=0 // pred_fallthru
    _
  // Predicated region
  $region6: #{dyan_encoder_forward.3} parent=0 // pred_check
    _
  $region7: #{dyan_encoder_forward.3} parent=0 // pred_check_branch
    %15 = sbr.rel (0) target = $region9
  $region8: #{dyan_encoder_forward.3} parent=0 // pred_region
    _
  $region9: #{dyan_encoder_forward.3} parent=0 // pred_fallthru
    _
  // Predicated region
  $region10: #{dyan_encoder_forward.3} parent=0 // pred_check
    _
  $region11: #{dyan_encoder_forward.3} parent=0 // pred_check_branch
    %17 = sbr.rel (0) target = $region13
  $region12: #{dyan_encoder_forward.3} parent=0 // pred_region
    _
  $region13: #{dyan_encoder_forward.3} parent=0 // pred_fallthru
    _
  // Predicated region
  $region14: #{dyan_encoder_forward.3} parent=0 // pred_check
    _
  $region15: #{dyan_encoder_forward.3} parent=0 // pred_check_branch
    %19 = sbr.rel (0) target = $region17
  $region16: #{dyan_encoder_forward.3} parent=0 // pred_region
    _
  $region17: #{dyan_encoder_forward.3} parent=0 // pred_fallthru
    _
  // Predicated region
  $region18: #{dyan_encoder_forward.3} parent=0 // pred_check
    _
  $region19: #{dyan_encoder_forward.3} parent=0 // pred_check_branch
    %21 = sbr.rel (0) target = $region21
  $region20: #{dyan_encoder_forward.3} parent=0 // pred_region
    _
  $region21: #{dyan_encoder_forward.3} parent=0 // pred_fallthru
    _
  %v22 = vld [vmem:[%s0] sm:$0xff]
  %v23 = vld [vmem:[%s3] sm:$0xff]
  %24 = vxpose.xlu0.b32.start [1/16] %v22, 128
  %25 = vxpose.xlu0.b32.cont [2/16] 0.0, 128
  %26 = vxpose.xlu0.b32.cont [3/16] 0.0, 128
  %27 = vxpose.xlu0.b32.cont [4/16] 0.0, 128
  %28 = vxpose.xlu0.b32.cont [5/16] 0.0, 128
  %29 = vxpose.xlu0.b32.cont [6/16] 0.0, 128
  %30 = vxpose.xlu0.b32.cont [7/16] 0.0, 128
  %31 = vxpose.xlu0.b32.cont [8/16] 0.0, 128
  %32 = vxpose.xlu0.b32.cont [9/16] 0.0, 128
  %33 = vxpose.xlu0.b32.cont [10/16] 0.0, 128
  %34 = vxpose.xlu0.b32.cont [11/16] 0.0, 128
  %35 = vxpose.xlu0.b32.cont [12/16] 0.0, 128
  %36 = vxpose.xlu0.b32.cont [13/16] 0.0, 128
  %37 = vxpose.xlu0.b32.cont [14/16] 0.0, 128
  %38 = vxpose.xlu0.b32.cont [15/16] 0.0, 128
  %39 = vxpose.xlu0.b32.end [16/16] 0.0, 128
  %v40 = vpop.trf.xlu0
  %v41 = vpop.trf.xlu0
  %v42 = vpop.trf.xlu0
  %v43 = vpop.trf.xlu0
  %v44 = vpop.trf.xlu0
  %v45 = vpop.trf.xlu0
  %v46 = vpop.trf.xlu0
  %v47 = vpop.trf.xlu0
  %v48 = vpop.trf.xlu0
  %v49 = vpop.trf.xlu0
  %v50 = vpop.trf.xlu0
  %v51 = vpop.trf.xlu0
  %v52 = vpop.trf.xlu0
  %v53 = vpop.trf.xlu0
  %v54 = vpop.trf.xlu0
  %v55 = vpop.trf.xlu0
  %vm56 = vcmask 64512
  %v58 = vsel %vm56, %v40, 0
  %v61 = vsel %vm56, %v41, 0
  %v64 = vsel %vm56, %v42, 0
  %v67 = vsel %vm56, %v43, 0
  %v70 = vsel %vm56, %v44, 0
  %72 = vmatprep.subr.mxu0 0.0
  %73 = vmatpush1.msra.mxu0 %v23
  %74 = vmatprep.subr.mxu0 0.0
  %75 = vmatpush1.msra.mxu0 0.0
  %76 = vmatprep.subr.mxu0 0.0
  %77 = vmatpush1.msra.mxu0 0.0
  %78 = vmatprep.subr.mxu0 0.0
  %79 = vmatpush1.msra.mxu0 0.0
  %80 = vmatprep.subr.mxu0 0.0
  %81 = vmatpush1.msra.mxu0 0.0
  %82 = vmatprep.subr.mxu0 0.0
  %83 = vmatpush1.msra.mxu0 0.0
  %84 = vmatprep.subr.mxu0 0.0
  %85 = vmatpush1.msra.mxu0 0.0
  %86 = vmatprep.subr.mxu0 0.0
  %87 = vmatpush1.msra.mxu0 0.0
  %88 = vmatprep.subr.mxu0 0.0
  %89 = vmatpush1.msra.mxu0 0.0
  %90 = vmatprep.subr.mxu0 0.0
  %91 = vmatpush1.msra.mxu0 0.0
  %92 = vmatprep.subr.mxu0 0.0
  %93 = vmatpush1.msra.mxu0 0.0
  %94 = vmatprep.subr.mxu0 0.0
  %95 = vmatpush1.msra.mxu0 0.0
  %96 = vmatprep.subr.mxu0 0.0
  %97 = vmatpush1.msra.mxu0 0.0
  %98 = vmatprep.subr.mxu0 0.0
  %99 = vmatpush1.msra.mxu0 0.0
  %100 = vmatprep.subr.mxu0 0.0
  %101 = vmatpush1.msra.mxu0 0.0
  %102 = vmatprep.subr.mxu0 0.0
  %103 = vmatpush1.msra.mxu0 0.0
  %104 = vmatprep.subr.mxu0 0.0
  %105 = vmatpush1.msra.mxu0 0.0
  %106 = vmatprep.subr.mxu0 0.0
  %107 = vmatpush1.msra.mxu0 0.0
  %108 = vmatprep.subr.mxu0 0.0
  %109 = vmatpush1.msra.mxu0 0.0
  %110 = vmatprep.subr.mxu0 0.0
  %111 = vmatpush1.msra.mxu0 0.0
  %112 = vmatprep.subr.mxu0 0.0
  %113 = vmatpush1.msra.mxu0 0.0
  %114 = vmatprep.subr.mxu0 0.0
  %115 = vmatpush1.msra.mxu0 0.0
  %116 = vmatprep.subr.mxu0 0.0
  %117 = vmatpush1.msra.mxu0 0.0
  %118 = vmatprep.subr.mxu0 0.0
  %119 = vmatpush1.msra.mxu0 0.0
  %120 = vmatprep.subr.mxu0 0.0
  %121 = vmatpush1.msra.mxu0 0.0
  %122 = vmatprep.subr.mxu0 0.0
  %123 = vmatpush1.msra.mxu0 0.0
  %124 = vmatprep.subr.mxu0 0.0
  %125 = vmatpush1.msra.mxu0 0.0
  %126 = vmatprep.subr.mxu0 0.0
  %127 = vmatpush1.msra.mxu0 0.0
  %128 = vmatprep.subr.mxu0 0.0
  %129 = vmatpush1.msra.mxu0 0.0
  %130 = vmatprep.subr.mxu0 0.0
  %131 = vmatpush1.msra.mxu0 0.0
  %132 = vmatprep.subr.mxu0 0.0
  %133 = vmatpush1.msra.mxu0 0.0
  %134 = vmatprep.subr.mxu0 0.0
  %135 = vmatpush1.msra.mxu0 0.0
  %136 = vmatprep.mubr.f32.mxu0 0.0
  %137 = vmatmul.mubr.f32.gmra.mrb[0].mxu0 %v58
  %v138 = vpop.f32.mrb[0].mxu0
  %v139 = vadd.f32 0.0, %v138
  %v140 = vpop.f32.mrb[0].mxu0
  %141 = vmatprep.mubr.f32.mxu0 0.0
  %142 = vmatmul.mubr.f32.gmra.mrb[0].mxu0 %v61
  %v143 = vpop.f32.mrb[0].mxu0
  %v144 = vadd.f32 0.0, %v143
  %v145 = vpop.f32.mrb[0].mxu0
  %146 = vmatprep.mubr.f32.mxu0 0.0
  %147 = vmatmul.mubr.f32.gmra.mrb[0].mxu0 %v64
  %v148 = vpop.f32.mrb[0].mxu0
  %v149 = vadd.f32 0.0, %v148
  %v150 = vpop.f32.mrb[0].mxu0
  %151 = vmatprep.mubr.f32.mxu0 0.0
  %152 = vmatmul.mubr.f32.gmra.mrb[0].mxu0 %v67
  %v153 = vpop.f32.mrb[0].mxu0
  %v154 = vadd.f32 0.0, %v153
  %v155 = vpop.f32.mrb[0].mxu0
  %156 = vmatprep.mubr.f32.mxu0 0.0
  %157 = vmatmul.mubr.f32.gmra.mrb[0].mxu0 %v70
  %v158 = vpop.f32.mrb[0].mxu0
  %v159 = vadd.f32 0.0, %v158
  %v160 = vpop.f32.mrb[0].mxu0
  %161 = vdwg.mxu0
  %v162 = vld [vmem:[%s4] sm:$0xff]
  %v163 = vld [vmem:[%s4 + $0x8] sm:$0xff]
  %v164 = vld [vmem:[%s4 + $0x10] sm:$0xff]
  %v165 = vld [vmem:[%s4 + $0x18] sm:$0xff]
  %v166 = vld [vmem:[%s4 + $0x20] sm:$0x1]
  %v167 = vsub.f32 %v139, %v162
  %v168 = vsub.f32 %v144, %v163
  %v169 = vsub.f32 %v149, %v164
  %v170 = vsub.f32 %v154, %v165
  %v171 = vsub.f32 %v159, %v166
  %v172 = vadd.f32 %v139, %v162
  %v173 = vadd.f32 %v144, %v163
  %v174 = vadd.f32 %v149, %v164
  %v175 = vadd.f32 %v154, %v165
  %v176 = vadd.f32 %v159, %v166
  %177 = vst [vmem:[#allocation2] sm:$0xff] 0.0
  %178 = vst [vmem:[#allocation2 + $0x8] sm:$0xff] 0.0
  %179 = vst [vmem:[#allocation2 + $0x10] sm:$0xff] 0.0
  %180 = vst [vmem:[#allocation2 + $0x18] sm:$0xff] 0.0
  %181 = vst [vmem:[#allocation2 + $0x20] sm:$0x1] 0.0
  %182 = vst [vmem:[#allocation3] sm:$0xff] 0.0
  %183 = vst [vmem:[#allocation3 + $0x8] sm:$0xff] 0.0
  %184 = vst [vmem:[#allocation3 + $0x10] sm:$0xff] 0.0
  %185 = vst [vmem:[#allocation3 + $0x18] sm:$0xff] 0.0
  %186 = vst [vmem:[#allocation3 + $0x20] sm:$0x1] 0.0
  %s187 = scalar_lea.smem [#allocation4], 0
  %188 = sst [smem:[%s187]] 1.0
  %s189 = scalar_lea.smem [#allocation5], 0
  %190 = sst [smem:[%s189]] 0
  %v191 = vld [vmem:[%s1] sm:$0xff]
  %v192 = vld [vmem:[%s1 + $0x8] sm:$0xff]
  %v193 = vld [vmem:[%s1 + $0x10] sm:$0xff]
  %v194 = vld [vmem:[%s1 + $0x18] sm:$0xff]
  %v195 = vld [vmem:[%s1 + $0x20] sm:$0x1]
  loop: start=0, step=1, limit=100
  $region22: #{dyan_encoder_forward.3} parent=0 // loop_pre_header
    _
  $region23: #{dyan_encoder_forward.3} parent=0 // loop_header
    %s197 = sphi 0, %s201
    %p198 = scmp.ge.s32.totalorder %s197, 100
  $region24: #{dyan_encoder_forward.3} parent=0 // loop_header_branch
    %200 = sbr.rel (%p198) target = $region28
  $region25: #{dyan_encoder_forward.3} parent=0 // loop_body
    %s202 = sld [smem:[#allocation5]]
    %p203 = scmp.eq.s32.totalorder %s202, 0
    // Predicated region
    $region29: #{dyan_encoder_forward.3} parent=25 // pred_check
      %p204 = pneg %p203
    $region30: #{dyan_encoder_forward.3} parent=25 // pred_check_branch
      %206 = sbr.rel (%p204) target = $region32
    $region31: #{dyan_encoder_forward.3} parent=25 // pred_region
      %v207 = vld [vmem:[#allocation2] sm:$0xff]
      %v208 = vld [vmem:[#allocation2 + $0x8] sm:$0xff]
      %v209 = vld [vmem:[#allocation2 + $0x10] sm:$0xff]
      %v210 = vld [vmem:[#allocation2 + $0x18] sm:$0xff]
      %v211 = vld [vmem:[#allocation2 + $0x20] sm:$0x1]
      %v212 = vld [vmem:[#allocation3] sm:$0xff]
      %v213 = vld [vmem:[#allocation3 + $0x8] sm:$0xff]
      %v214 = vld [vmem:[#allocation3 + $0x10] sm:$0xff]
      %v215 = vld [vmem:[#allocation3 + $0x18] sm:$0xff]
      %v216 = vld [vmem:[#allocation3 + $0x20] sm:$0x1]
      %s217 = sld [smem:[#allocation4]]
      %vm218 = vcmask 269312
      %v220 = vsel %vm218, %v191, 0
      %v223 = vsel %vm218, %v192, 0
      %v226 = vsel %vm218, %v193, 0
      %v229 = vsel %vm218, %v194, 0
      %v232 = vsel %vm218, %v195, 0
      %vm234 = vcmask 1040384
      %v236 = vsel %vm234, %v216, 0
      %238 = vmatprep.subr.mxu0 0.0
      %239 = vmatpush1.msra.mxu0 %v212
      %240 = vmatprep.subr.mxu0 0.0
      %241 = vmatpush1.msra.mxu0 %v213
      %242 = vmatprep.subr.mxu0 0.0
      %243 = vmatpush1.msra.mxu0 %v214
      %244 = vmatprep.subr.mxu0 0.0
      %245 = vmatpush1.msra.mxu0 %v215
      %246 = vmatprep.subr.mxu0 0.0
      %247 = vmatpush1.msra.mxu0 %v236
      %248 = vmatprep.subr.mxu0 0.0
      %249 = vmatpush1.msra.mxu0 0.0
      %250 = vmatprep.subr.mxu0 0.0
      %251 = vmatpush1.msra.mxu0 0.0
      %252 = vmatprep.subr.mxu0 0.0
      %253 = vmatpush1.msra.mxu0 0.0
      %254 = vmatprep.subr.mxu0 0.0
      %255 = vmatpush1.msra.mxu0 0.0
      %256 = vmatprep.subr.mxu0 0.0
      %257 = vmatpush1.msra.mxu0 0.0
      %258 = vmatprep.subr.mxu0 0.0
      %259 = vmatpush1.msra.mxu0 0.0
      %260 = vmatprep.subr.mxu0 0.0
      %261 = vmatpush1.msra.mxu0 0.0
      %262 = vmatprep.subr.mxu0 0.0
      %263 = vmatpush1.msra.mxu0 0.0
      %264 = vmatprep.subr.mxu0 0.0
      %265 = vmatpush1.msra.mxu0 0.0
      %266 = vmatprep.subr.mxu0 0.0
      %267 = vmatpush1.msra.mxu0 0.0
      %268 = vmatprep.subr.mxu0 0.0
      %269 = vmatpush1.msra.mxu0 0.0
      %270 = vmatprep.subr.mxu0 0.0
      %271 = vmatpush1.msra.mxu0 0.0
      %272 = vmatprep.subr.mxu0 0.0
      %273 = vmatpush1.msra.mxu0 0.0
      %274 = vmatprep.subr.mxu0 0.0
      %275 = vmatpush1.msra.mxu0 0.0
      %276 = vmatprep.subr.mxu0 0.0
      %277 = vmatpush1.msra.mxu0 0.0
      %278 = vmatprep.subr.mxu0 0.0
      %279 = vmatpush1.msra.mxu0 0.0
      %280 = vmatprep.subr.mxu0 0.0
      %281 = vmatpush1.msra.mxu0 0.0
      %282 = vmatprep.subr.mxu0 0.0
      %283 = vmatpush1.msra.mxu0 0.0
      %284 = vmatprep.subr.mxu0 0.0
      %285 = vmatpush1.msra.mxu0 0.0
      %286 = vmatprep.subr.mxu0 0.0
      %287 = vmatpush1.msra.mxu0 0.0
      %288 = vmatprep.subr.mxu0 0.0
      %289 = vmatpush1.msra.mxu0 0.0
      %290 = vmatprep.subr.mxu0 0.0
      %291 = vmatpush1.msra.mxu0 0.0
      %292 = vmatprep.subr.mxu0 0.0
      %293 = vmatpush1.msra.mxu0 0.0
      %294 = vmatprep.subr.mxu0 0.0
      %295 = vmatpush1.msra.mxu0 0.0
      %296 = vmatprep.subr.mxu0 0.0
      %297 = vmatpush1.msra.mxu0 0.0
      %298 = vmatprep.subr.mxu0 0.0
      %299 = vmatpush1.msra.mxu0 0.0
      %300 = vmatprep.subr.mxu0 0.0
      %301 = vmatpush1.msra.mxu0 0.0
      %302 = vmatprep.mubr.f32.mxu0 0.0
      %303 = vmatmul.mubr.f32.gmra.mrb[0].mxu0 %v220
      %v304 = vpop.f32.mrb[0].mxu0
      %v305 = vadd.f32 0.0, %v304
      %v306 = vpop.f32.mrb[0].mxu0
      %307 = vmatprep.mubr.f32.mxu0 0.0
      %308 = vmatmul.mubr.f32.gmra.mrb[0].mxu0 %v223
      %v309 = vpop.f32.mrb[0].mxu0
      %v310 = vadd.f32 0.0, %v309
      %v311 = vpop.f32.mrb[0].mxu0
      %312 = vmatprep.mubr.f32.mxu0 0.0
      %313 = vmatmul.mubr.f32.gmra.mrb[0].mxu0 %v226
      %v314 = vpop.f32.mrb[0].mxu0
      %v315 = vadd.f32 0.0, %v314
      %v316 = vpop.f32.mrb[0].mxu0
      %317 = vmatprep.mubr.f32.mxu0 0.0
      %318 = vmatmul.mubr.f32.gmra.mrb[0].mxu0 %v229
      %v319 = vpop.f32.mrb[0].mxu0
      %v320 = vadd.f32 0.0, %v319
      %v321 = vpop.f32.mrb[0].mxu0
      %322 = vmatprep.mubr.f32.mxu0 0.0
      %323 = vmatmul.mubr.f32.gmra.mrb[0].mxu0 %v232
      %v324 = vpop.f32.mrb[0].mxu0
      %v325 = vadd.f32 0.0, %v324
      %v326 = vpop.f32.mrb[0].mxu0
      %327 = vdwg.mxu0
      %v328 = vadd.f32 %v305, %v167
      %v329 = vadd.f32 %v310, %v168
      %v330 = vadd.f32 %v315, %v169
      %v331 = vadd.f32 %v320, %v170
      %v332 = vadd.f32 %v325, %v171
      %v333 = vmax.f32 %v328, 0.0
      %v334 = vmax.f32 %v329, 0.0
      %v335 = vmax.f32 %v330, 0.0
      %v336 = vmax.f32 %v331, 0.0
      %v337 = vmax.f32 %v332, 0.0
      %v338 = vadd.f32 %v305, %v172
      %v339 = vadd.f32 %v310, %v173
      %v340 = vadd.f32 %v315, %v174
      %v341 = vadd.f32 %v320, %v175
      %v342 = vadd.f32 %v325, %v176
      %v343 = vmin.f32 %v338, 0.0
      %v344 = vmin.f32 %v339, 0.0
      %v345 = vmin.f32 %v340, 0.0
      %v346 = vmin.f32 %v341, 0.0
      %v347 = vmin.f32 %v342, 0.0
      %v348 = vadd.f32 %v333, %v343
      %v349 = vadd.f32 %v334, %v344
      %v350 = vadd.f32 %v335, %v345
      %v351 = vadd.f32 %v336, %v346
      %v352 = vadd.f32 %v337, %v347
      %s353 = smul.f32 %s217, 4.0
      %s354 = smul.f32 %s353, %s217
      %s355 = sadd.f32 %s354, 1.0
      %v356 = vstv %s355
      %v357 = vrsqrt.pop %v356
      %v358 = vmul.f32 %v356, %v357
      %vm359 = vcmp.eq.f32.partialorder %v356, inf
      %v360 = vsel %vm359, %v356, %v358
      %vm361 = vcmp.eq.f32.partialorder %v356, 0.0
      %v362 = vand.u32 %v356, 2147483648
      %v363 = vsel %vm361, %v362, %v360
      %s364 = vtos %v363
      %s365 = sadd.f32 %s364, 1.0
      %s366 = smul.f32 %s365, 0.5
      %s367 = ssub.f32 %s217, 1.0
      %v368 = vstv %s366
      %v369 = vrcp.pop %v368
      %s370 = vtos %v369
      %s371 = smul.f32 %s367, %s370
      %v372 = vsub.f32 %v348, %v207
      %v373 = vsub.f32 %v349, %v208
      %v374 = vsub.f32 %v350, %v209
      %v375 = vsub.f32 %v351, %v210
      %v376 = vsub.f32 %v352, %v211
      %v377 = vstv %s371
      %v378 = vmul.f32 %v377, %v372
      %v379 = vmul.f32 %v377, %v373
      %v380 = vmul.f32 %v377, %v374
      %v381 = vmul.f32 %v377, %v375
      %v382 = vmul.f32 %v377, %v376
      %v383 = vadd.f32 %v348, %v378
      %v384 = vadd.f32 %v349, %v379
      %v385 = vadd.f32 %v350, %v380
      %v386 = vadd.f32 %v351, %v381
      %v387 = vadd.f32 %v352, %v382
      %388 = vst [vmem:[#allocation3] sm:$0xff] %v383
      %389 = vst [vmem:[#allocation3 + $0x8] sm:$0xff] %v384
      %390 = vst [vmem:[#allocation3 + $0x10] sm:$0xff] %v385
      %391 = vst [vmem:[#allocation3 + $0x18] sm:$0xff] %v386
      %392 = vst [vmem:[#allocation3 + $0x20] sm:$0x1] %v387
      %393 = vst [vmem:[#allocation2] sm:$0xff] %v348
      %394 = vst [vmem:[#allocation2 + $0x8] sm:$0xff] %v349
      %395 = vst [vmem:[#allocation2 + $0x10] sm:$0xff] %v350
      %396 = vst [vmem:[#allocation2 + $0x18] sm:$0xff] %v351
      %397 = vst [vmem:[#allocation2 + $0x20] sm:$0x1] %v352
      %398 = sst [smem:[%s187]] %s366
      %p399 = scmp.lt.s32.totalorder %s197, 0
      %s400 = ssub.s32 0, %s197
      %s401 = scalar_select %p399, %s400, %s197
      %s402 = sand.u32 %s401, 3
      %s403 = ssub.s32 0, %s402
      %s404 = scalar_select %p399, %s403, %s402
      %p405 = scmp.ne.s32.totalorder %s404, 0
      %p406 = scmp.lt.s32.totalorder %s404, 0
      %p407 = pnand %p406, %p405
      %p408 = pneg %p407
      %s409 = sadd.s32 %s404, 4
      %s410 = scalar_select %p408, %s409, %s404
      %p411 = scmp.eq.s32.totalorder %s410, 0
      // Predicated region
      $region33: #{dyan_encoder_forward.3} parent=31 // pred_check
        %p412 = pneg %p411
      $region34: #{dyan_encoder_forward.3} parent=31 // pred_check_branch
        %414 = sbr.rel (%p412) target = $region36
      $region35: #{dyan_encoder_forward.3} parent=31 // pred_region
        %p415 = scmp.eq.s32.totalorder %s197, 0
        %s416 = scalar_select %p415, 16.0, 33.0
        %v417 = vmul.f32 %v372, %v372
        %v418 = vmul.f32 %v373, %v373
        %v419 = vmul.f32 %v374, %v374
        %v420 = vmul.f32 %v375, %v375
        %v421 = vmul.f32 %v376, %v376
        %v422 = vadd.f32 %v417, %v418
        %v423 = vadd.f32 %v422, %v419
        %v424 = vadd.f32 %v423, %v420
        %v425 = vsel %vm234, %v421, 0.0
        %v426 = vadd.f32 %v424, %v425
        %427 = vadd.xlane.f32.xlu0 %v426
        %v428 = vpop.xlane.xlu0 %427
        %v429 = vrot.slane %v428, 4
        %v430 = vadd.f32 %v428, %v429
        %v431 = vrot.slane %v430, 2
        %v432 = vadd.f32 %v430, %v431
        %v433 = vrot.slane %v432, 1
        %v434 = vadd.f32 %v432, %v433
        %s435 = vtos %v434
        %v436 = vstv %s435
        %v437 = vrsqrt.pop %v436
        %v438 = vmul.f32 %v436, %v437
        %vm439 = vcmp.eq.f32.partialorder %v436, inf
        %v440 = vsel %vm439, %v436, %v438
        %vm441 = vcmp.eq.f32.partialorder %v436, 0.0
        %v442 = vand.u32 %v436, 2147483648
        %v443 = vsel %vm441, %v442, %v440
        %s444 = vtos %v443
        %v445 = vstv %s416
        %v446 = vrcp.pop %v445
        %s447 = vtos %v446
        %s448 = smul.f32 %s444, %s447
        %p449 = scmp.lt.f32.partialorder %s448, 1e-05
        %s450 = scalar_select %p449, 1, 0
        %451 = sst [smem:[%s189]] %s450
      $region36: #{dyan_encoder_forward.3} parent=31 // pred_fallthru
        _
    $region32: #{dyan_encoder_forward.3} parent=25 // pred_fallthru
      _
  $region26: #{dyan_encoder_forward.3} parent=0 // loop_footer
    %s201 = sadd.s32 1, %s197
  $region27: #{dyan_encoder_forward.3} parent=0 // loop_footer_branch
    %196 = sbr.rel target = $region23
  $region28: #{dyan_encoder_forward.3} parent=0 // loop_exit
    _
  %v452 = vld [vmem:[#allocation2] sm:$0xff]
  %v453 = vld [vmem:[#allocation2 + $0x8] sm:$0xff]
  %v454 = vld [vmem:[#allocation2 + $0x10] sm:$0xff]
  %v455 = vld [vmem:[#allocation2 + $0x18] sm:$0xff]
  %v456 = vld [vmem:[#allocation2 + $0x20] sm:$0x1]
  %457 = vst [vmem:[%s5] sm:$0xff] %v452
  %458 = vst [vmem:[%s5 + $0x8] sm:$0xff] %v453
  %459 = vst [vmem:[%s5 + $0x10] sm:$0xff] %v454
  %460 = vst [vmem:[%s5 + $0x18] sm:$0xff] %v455
  %461 = vst [vmem:[%s5 + $0x20] sm:$0x1] %v456
  %v462 = vld [vmem:[%s2] sm:$0xff]
  %vm463 = vcmask 269312
  %v465 = vsel %vm463, %v462, 0
  %vm467 = vcmask 1040384
  %v469 = vsel %vm467, %v456, 0
  %471 = vmatprep.subr.mxu0 0.0
  %472 = vmatpush1.msra.mxu0 %v452
  %473 = vmatprep.subr.mxu0 0.0
  %474 = vmatpush1.msra.mxu0 %v453
  %475 = vmatprep.subr.mxu0 0.0
  %476 = vmatpush1.msra.mxu0 %v454
  %477 = vmatprep.subr.mxu0 0.0
  %478 = vmatpush1.msra.mxu0 %v455
  %479 = vmatprep.subr.mxu0 0.0
  %480 = vmatpush1.msra.mxu0 %v469
  %481 = vmatprep.subr.mxu0 0.0
  %482 = vmatpush1.msra.mxu0 0.0
  %483 = vmatprep.subr.mxu0 0.0
  %484 = vmatpush1.msra.mxu0 0.0
  %485 = vmatprep.subr.mxu0 0.0
  %486 = vmatpush1.msra.mxu0 0.0
  %487 = vmatprep.subr.mxu0 0.0
  %488 = vmatpush1.msra.mxu0 0.0
  %489 = vmatprep.subr.mxu0 0.0
  %490 = vmatpush1.msra.mxu0 0.0
  %491 = vmatprep.subr.mxu0 0.0
  %492 = vmatpush1.msra.mxu0 0.0
  %493 = vmatprep.subr.mxu0 0.0
  %494 = vmatpush1.msra.mxu0 0.0
  %495 = vmatprep.subr.mxu0 0.0
  %496 = vmatpush1.msra.mxu0 0.0
  %497 = vmatprep.subr.mxu0 0.0
  %498 = vmatpush1.msra.mxu0 0.0
  %499 = vmatprep.subr.mxu0 0.0
  %500 = vmatpush1.msra.mxu0 0.0
  %501 = vmatprep.subr.mxu0 0.0
  %502 = vmatpush1.msra.mxu0 0.0
  %503 = vmatprep.subr.mxu0 0.0
  %504 = vmatpush1.msra.mxu0 0.0
  %505 = vmatprep.subr.mxu0 0.0
  %506 = vmatpush1.msra.mxu0 0.0
  %507 = vmatprep.subr.mxu0 0.0
  %508 = vmatpush1.msra.mxu0 0.0
  %509 = vmatprep.subr.mxu0 0.0
  %510 = vmatpush1.msra.mxu0 0.0
  %511 = vmatprep.subr.mxu0 0.0
  %512 = vmatpush1.msra.mxu0 0.0
  %513 = vmatprep.subr.mxu0 0.0
  %514 = vmatpush1.msra.mxu0 0.0
  %515 = vmatprep.subr.mxu0 0.0
  %516 = vmatpush1.msra.mxu0 0.0
  %517 = vmatprep.subr.mxu0 0.0
  %518 = vmatpush1.msra.mxu0 0.0
  %519 = vmatprep.subr.mxu0 0.0
  %520 = vmatpush1.msra.mxu0 0.0
  %521 = vmatprep.subr.mxu0 0.0
  %522 = vmatpush1.msra.mxu0 0.0
  %523 = vmatprep.subr.mxu0 0.0
  %524 = vmatpush1.msra.mxu0 0.0
  %525 = vmatprep.subr.mxu0 0.0
  %526 = vmatpush1.msra.mxu0 0.0
  %527 = vmatprep.subr.mxu0 0.0
  %528 = vmatpush1.msra.mxu0 0.0
  %529 = vmatprep.subr.mxu0 0.0
  %530 = vmatpush1.msra.mxu0 0.0
  %531 = vmatprep.subr.mxu0 0.0
  %532 = vmatpush1.msra.mxu0 0.0
  %533 = vmatprep.subr.mxu0 0.0
  %534 = vmatpush1.msra.mxu0 0.0
  %535 = vmatprep.mubr.f32.mxu0 0.0
  %536 = vmatmul.mubr.f32.gmra.mrb[0].mxu0 %v465
  %v537 = vpop.f32.mrb[0].mxu0
  %v538 = vadd.f32 0.0, %v537
  %v539 = vpop.f32.mrb[0].mxu0
  %540 = vdwg.mxu0
  %541 = vst [vmem:[%s6] sm:$0xff] %v538
  // Predicated region
  $region37: #{dyan_encoder_forward.3} parent=0 // pred_check
    _
  $region38: #{dyan_encoder_forward.3} parent=0 // pred_check_branch
    %543 = sbr.rel (0) target = $region40
  $region39: #{dyan_encoder_forward.3} parent=0 // pred_region
    _
  $region40: #{dyan_encoder_forward.3} parent=0 // pred_fallthru
    _
  // Predicated region
  $region41: #{dyan_encoder_forward.3} parent=0 // pred_check
    _
  $region42: #{dyan_encoder_forward.3} parent=0 // pred_check_branch
    %545 = sbr.rel (0) target = $region44
  $region43: #{dyan_encoder_forward.3} parent=0 // pred_region
    _
  $region44: #{dyan_encoder_forward.3} parent=0 // pred_fallthru
    _
  // Predicated region
  $region45: #{dyan_encoder_forward.3} parent=0 // pred_check
    _
  $region46: #{dyan_encoder_forward.3} parent=0 // pred_check_branch
    %547 = sbr.rel (0) target = $region48
  $region47: #{dyan_encoder_forward.3} parent=0 // pred_region
    _
  $region48: #{dyan_encoder_forward.3} parent=0 // pred_fallthru
    _
  // Predicated region
  $region49: #{dyan_encoder_forward.3} parent=0 // pred_check
    _
  $region50: #{dyan_encoder_forward.3} parent=0 // pred_check_branch
    %549 = sbr.rel (0) target = $region52
  $region51: #{dyan_encoder_forward.3} parent=0 // pred_region
    _
  $region52: #{dyan_encoder_forward.3} parent=0 // pred_fallthru
    _

</llo_original>
